<compile_context>
chip_gen: v7x
topology: tpu7x:2x2x1
jax: 0.10.0
libtpu: 0.0.40
codegen_flags: <defaults>
</compile_context>

<pallas_src>
import functools

import jax
import jax.numpy as jnp
import numpy as np
from jax import lax
from jax.experimental import pallas as pl
from jax.experimental.pallas import tpu as pltpu

KSIZE = 7
PAD = (KSIZE - 1) // 2   # 3
IN_CH = 2                # [max, mean]


# --------------------------------------------------------------------------
# helpers
# --------------------------------------------------------------------------
def _is_pow2(n):
    return n > 0 and (n & (n - 1)) == 0


def _tree_sum(vals):
    vals = list(vals)
    while len(vals) > 1:
        nxt = [vals[i] + vals[i + 1] for i in range(0, len(vals) - 1, 2)]
        if len(vals) % 2:
            nxt.append(vals[-1])
        vals = nxt
    return vals[0]


def _pos_col(col_ref, H, W):
    """Flat pixel index and its column, on (1, HW)."""
    HW = H * W
    pos = lax.broadcasted_iota(jnp.int32, (1, HW), 1)
    if col_ref is None:            # W is a power of two: no VMEM buffer needed
        col = pos & (W - 1)
    else:
        col = col_ref[...]
    return pos, col


def _conv7x7_sigmoid(x_max, x_mean, w_ref, col, pos, H, W):
    """Separable zero-padded 7x7 conv (2->1 ch, no bias) on flat (1, HW) pooled
    maps, followed by sigmoid.  18 XLU rolls + 18 selects total."""
    HW = H * W

    # Stage 1: column-shifted, column-masked copies of both pooled maps.
    mx = {0: x_max}
    mn = {0: x_mean}
    for dx in range(-PAD, PAD + 1):
        if dx == 0:
            continue
        ok = (col + dx >= 0) & (col + dx < W)
        shift = (-dx) % HW
        mx[dx] = jnp.where(ok, pltpu.roll(x_max, shift, axis=1), 0.0)
        mn[dx] = jnp.where(ok, pltpu.roll(x_mean, shift, axis=1), 0.0)

    # Stage 2: per-dy weighted sums (VPU MACs with SMEM scalars), then one row
    # roll + one row mask per dy != 0.  Row rolls are multiples of W so the
    # column masking from stage 1 is preserved.
    parts = []
    for dy in range(-PAD, PAD + 1):
        kh = dy + PAD
        p = None
        for dx in range(-PAD, PAD + 1):
            kw = dx + PAD
            w_max = w_ref[0 * KSIZE * KSIZE + kh * KSIZE + kw]
            w_mean = w_ref[1 * KSIZE * KSIZE + kh * KSIZE + kw]
            t = w_max * mx[dx] + w_mean * mn[dx]
            p = t if p is None else p + t
        if dy != 0:
            ok = (pos + dy * W >= 0) & (pos + dy * W < HW)
            shift = (-(dy * W)) % HW
            p = jnp.where(ok, pltpu.roll(p, shift, axis=1), 0.0)
        parts.append(p)

    return jax.nn.sigmoid(_tree_sum(parts))        # (1, HW) f32


# --------------------------------------------------------------------------
# kernels
# --------------------------------------------------------------------------
def _spatial_gate_kernel(*refs, H, W, pow2):
    """Single-pass kernel: whole (1, C, HW) slab per grid step."""
    if pow2:
        w_ref, x_ref, o_ref = refs
        col_ref = None
    else:
        w_ref, col_ref, x_ref, o_ref = refs

    C = x_ref.shape[1]

    # ---- ChannelPool over channels (tiny f32 pooled maps) ----
    x = x_ref[0]                                                     # (C, HW)
    x_max = jnp.max(x, axis=0, keepdims=True).astype(jnp.float32)
    x_mean = jnp.sum(x, axis=0, keepdims=True, dtype=jnp.float32) * (1.0 / C)

    pos, col = _pos_col(col_ref, H, W)
    scale = _conv7x7_sigmoid(x_max, x_mean, w_ref, col, pos, H, W)   # (1, HW)

    # Re-index x_ref for the rescale instead of keeping `x` live across the
    # unrolled conv (low vreg pressure); lane-dense store in the input dtype.
    o_ref[0] = (x_ref[0] * scale.astype(o_ref.dtype)).astype(o_ref.dtype)


def _pool_scale_kernel(*refs, H, W, C, pow2):
    """C-tiled pooling + conv + sigmoid -> (N, 1, HW) scale.  Grid (N, C/C_T),
    C axis is the 'arbitrary' reduction axis."""
    if pow2:
        w_ref, x_ref, scale_ref, max_sc, sum_sc = refs
        col_ref = None
    else:
        w_ref, col_ref, x_ref, scale_ref, max_sc, sum_sc = refs

    ci = pl.program_id(1)

    @pl.when(ci == 0)
    def _():
        max_sc[...] = jnp.full_like(max_sc, -jnp.inf)
        sum_sc[...] = jnp.zeros_like(sum_sc)

    xt = x_ref[0]                                                    # (C_T, HW)
    max_sc[...] = jnp.maximum(
        max_sc[...], jnp.max(xt, axis=0, keepdims=True).astype(jnp.float32))
    sum_sc[...] = sum_sc[...] + jnp.sum(xt, axis=0, keepdims=True,
                                        dtype=jnp.float32)

    @pl.when(ci == pl.num_programs(1) - 1)
    def _():
        pos, col = _pos_col(col_ref, H, W)
        scale = _conv7x7_sigmoid(max_sc[...], sum_sc[...] * (1.0 / C),
                                 w_ref, col, pos, H, W)
        scale_ref[0] = scale.astype(scale_ref.dtype)


def _rescale_kernel(scale_ref, x_ref, o_ref):
    """Pure streaming lane-dense rescale: out = x * scale."""
    s = scale_ref[0]                                                 # (1, HW)
    o_ref[0] = (x_ref[0] * s.astype(o_ref.dtype)).astype(o_ref.dtype)


# --------------------------------------------------------------------------
# wrapper
# --------------------------------------------------------------------------
def _vmem_budget_bytes():
    try:
        cap = int(pltpu.get_tpu_info().vmem_capacity_bytes)
    except Exception:
        cap = 64 * 1024 * 1024          # conservative fallback (v7x per-TC)
    # Never request all of physical VMEM: Mosaic needs internal scratch and the
    # pipeline needs headroom (48 MiB on v7x, 96 MiB on v5e/v6e).
    return max(16 * 1024 * 1024, (cap * 3) // 4)


def _largest_divisor_leq(n, target):
    target = max(1, min(n, int(target)))
    for d in range(target, 0, -1):
        if n % d == 0:
            return d
    return 1


def spatial_gate(x, conv_weight, *, force_split=False, c_tile=None):
    """x: (N, C, H, W), conv_weight: (1, 2, 7, 7) -> (N, C, H, W)."""
    N, C, H, W = x.shape
    HW = H * W
    itemsize = x.dtype.itemsize
    pow2 = _is_pow2(W)

    x_flat = x.reshape(N, C, HW)                      # lane-dense view (free)
    w_flat = conv_weight.reshape(-1).astype(jnp.float32)   # (2*7*7,) in SMEM

    vmem_budget = _vmem_budget_bytes()

    extra_args = []
    extra_specs = []
    if not pow2:
        col_ids = jnp.asarray((np.arange(HW, dtype=np.int32) % W).reshape(1, HW))
        extra_args.append(col_ids)
        extra_specs.append(pl.BlockSpec((1, HW), lambda *_: (0, 0)))

    # Single-kernel resident estimate: in + out slab blocks, double-buffered,
    # plus small pooled/conv intermediates.
    blk_bytes = C * HW * itemsize
    single_fits = 5 * blk_bytes + 64 * HW <= vmem_budget

    if single_fits and not force_split:
        # One HBM read + one HBM write of x (optimal on mem-bound v5e/v6e).
        kernel = functools.partial(_spatial_gate_kernel, H=H, W=W, pow2=pow2)
        out_flat = pl.pallas_call(
            kernel,
            out_shape=jax.ShapeDtypeStruct((N, C, HW), x.dtype),
            grid=(N,),
            in_specs=[pl.BlockSpec(memory_space=pltpu.MemorySpace.SMEM)]
                     + extra_specs
                     + [pl.BlockSpec((1, C, HW), lambda n: (n, 0, 0))],
            out_specs=pl.BlockSpec((1, C, HW), lambda n: (n, 0, 0)),
            compiler_params=pltpu.CompilerParams(
                dimension_semantics=("parallel",),
                vmem_limit_bytes=vmem_budget,
            ),
        )(w_flat, *extra_args, x_flat)
        return out_flat.reshape(N, C, H, W)

    # ---- large-slab path (v7x-sized C*HW): C-tiled scale + rescale kernels ----
    if c_tile is None:
        c_tile = max(1, vmem_budget // (6 * HW * itemsize))
    ct = _largest_divisor_leq(C, c_tile)
    n_ct = C // ct

    scale_kernel = functools.partial(_pool_scale_kernel, H=H, W=W, C=C, pow2=pow2)
    scale = pl.pallas_call(
        scale_kernel,
        out_shape=jax.ShapeDtypeStruct((N, 1, HW), jnp.float32),
        grid=(N, n_ct),
        in_specs=[pl.BlockSpec(memory_space=pltpu.MemorySpace.SMEM)]
                 + extra_specs
                 + [pl.BlockSpec((1, ct, HW), lambda n, c: (n, c, 0))],
        out_specs=pl.BlockSpec((1, 1, HW), lambda n, c: (n, 0, 0)),
        scratch_shapes=[pltpu.VMEM((1, HW), jnp.float32),   # running max
                        pltpu.VMEM((1, HW), jnp.float32)],  # running sum
        compiler_params=pltpu.CompilerParams(
            dimension_semantics=("parallel", "arbitrary"),
            vmem_limit_bytes=vmem_budget,
        ),
    )(w_flat, *extra_args, x_flat)

    out_flat = pl.pallas_call(
        _rescale_kernel,
        out_shape=jax.ShapeDtypeStruct((N, C, HW), x.dtype),
        grid=(N, n_ct),
        in_specs=[pl.BlockSpec((1, 1, HW), lambda n, c: (n, 0, 0)),
                  pl.BlockSpec((1, ct, HW), lambda n, c: (n, c, 0))],
        out_specs=pl.BlockSpec((1, ct, HW), lambda n, c: (n, c, 0)),
        compiler_params=pltpu.CompilerParams(
            dimension_semantics=("parallel", "parallel"),  # >=2 steps for megacore
            vmem_limit_bytes=vmem_budget,
        ),
    )(scale, x_flat)
    return out_flat.reshape(N, C, H, W)


# --------------------------------------------------------------------------
# pure-JAX reference
# --------------------------------------------------------------------------
def spatial_gate_reference(x, conv_weight):
    x_max = jnp.max(x, axis=1, keepdims=True)
    x_mean = jnp.mean(x, axis=1, keepdims=True)
    pooled = jnp.concatenate([x_max, x_mean], axis=1)          # (N, 2, H, W)
    y = lax.conv_general_dilated(
        pooled, conv_weight,
        window_strides=(1, 1), padding=[(PAD, PAD), (PAD, PAD)],
        dimension_numbers=("NCHW", "OIHW", "NCHW"),
    )                                                          # (N, 1, H, W)
    return x * jax.nn.sigmoid(y)


if __name__ == "__main__":
    key = jax.random.PRNGKey(0)
    kx, kw = jax.random.split(key)

    fan_in = IN_CH * KSIZE * KSIZE
    conv_weight = (jax.random.normal(kw, (1, IN_CH, KSIZE, KSIZE), dtype=jnp.float32)
                   / jnp.sqrt(fan_in))

    # 1) main shape, single-kernel path (power-of-two W, no col-ids buffer).
    x = jax.random.normal(kx, (2, 4, 16, 16), dtype=jnp.float32)
    out = jax.block_until_ready(spatial_gate(x, conv_weight))
    ref = spatial_gate_reference(x, conv_weight)
    np.testing.assert_allclose(np.asarray(out), np.asarray(ref), rtol=1e-5, atol=1e-4)

    # 2) non-power-of-two spatial size (exercises the col-ids path).
    x2 = jax.random.normal(jax.random.PRNGKey(1), (1, 3, 10, 12), dtype=jnp.float32)
    out2 = jax.block_until_ready(spatial_gate(x2, conv_weight))
    ref2 = spatial_gate_reference(x2, conv_weight)
    np.testing.assert_allclose(np.asarray(out2), np.asarray(ref2), rtol=1e-5, atol=1e-4)

    # 3) forced C-tiled split path (the route large-C / v7x shapes take).
    out3 = jax.block_until_ready(
        spatial_gate(x, conv_weight, force_split=True, c_tile=2))
    np.testing.assert_allclose(np.asarray(out3), np.asarray(ref), rtol=1e-5, atol=1e-4)

    print("KERNEL_OK")
</pallas_src>

<mosaic_0001>
module attributes {stable_mosaic.version = 11 : i64} {
  func.func @_spatial_gate_kernel(%arg0: i32, %arg1: memref<98xf32, #tpu.memory_space<smem>>, %arg2: memref<1x4x256xf32, #tpu.memory_space<vmem>>, %arg3: memref<1x4x256xf32, #tpu.memory_space<vmem>>) attributes {dimension_semantics = [#tpu.dimension_semantics<parallel>], iteration_bounds = array<i64: 2>, scalar_prefetch = 0 : i64, scratch_operands = 0 : i64, tpu.core_type = #tpu.core_type<tc>, window_params = [{transform_indices = @transform_0, window_bounds = array<i64: 98>}, {transform_indices = @transform_1, window_bounds = array<i64: 1, 4, 256>}, {transform_indices = @transform_2, window_bounds = array<i64: 1, 4, 256>}]} {
    %c0 = arith.constant 0 : index
    %c0_0 = arith.constant 0 : index
    %c0_1 = arith.constant 0 : index
    %0 = vector.load %arg2[%c0, %c0_0, %c0_1] : memref<1x4x256xf32, #tpu.memory_space<vmem>>, vector<1x4x256xf32>
    %1 = vector.shape_cast %0 : vector<1x4x256xf32> to vector<4x256xf32>
    %cst = arith.constant dense<0xFF800000> : vector<256xf32>
    %2 = vector.multi_reduction <maximumf>, %1, %cst [0] : vector<4x256xf32> to vector<256xf32>
    %3 = vector.shape_cast %2 : vector<256xf32> to vector<1x256xf32>
    %cst_2 = arith.constant dense<0.000000e+00> : vector<256xf32>
    %4 = vector.multi_reduction <add>, %1, %cst_2 [0] : vector<4x256xf32> to vector<256xf32>
    %5 = vector.shape_cast %4 : vector<256xf32> to vector<1x256xf32>
    %cst_3 = arith.constant 2.500000e-01 : f32
    %6 = vector.broadcast %cst_3 : f32 to vector<1x256xf32>
    %7 = arith.mulf %5, %6 : vector<1x256xf32>
    %8 = tpu.iota {dimensions = array<i32: 1>} : vector<1x256xi32>
    %c15_i32 = arith.constant 15 : i32
    %9 = vector.broadcast %c15_i32 : i32 to vector<1x256xi32>
    %10 = arith.andi %8, %9 : vector<1x256xi32>
    %c-3_i32 = arith.constant -3 : i32
    %11 = vector.broadcast %c-3_i32 : i32 to vector<1x256xi32>
    %12 = arith.addi %10, %11 : vector<1x256xi32>
    %c0_i32 = arith.constant 0 : i32
    %13 = vector.broadcast %c0_i32 : i32 to vector<1x256xi32>
    %14 = arith.cmpi sge, %12, %13 : vector<1x256xi32>
    %c-3_i32_4 = arith.constant -3 : i32
    %15 = vector.broadcast %c-3_i32_4 : i32 to vector<1x256xi32>
    %16 = arith.addi %10, %15 : vector<1x256xi32>
    %c16_i32 = arith.constant 16 : i32
    %17 = vector.broadcast %c16_i32 : i32 to vector<1x256xi32>
    %18 = arith.cmpi slt, %16, %17 : vector<1x256xi32>
    %19 = arith.andi %14, %18 : vector<1x256xi1>
    %c3_i32 = arith.constant 3 : i32
    %20 = tpu.dynamic_rotate %3 by %c3_i32 dim 1 : vector<1x256xf32>, i32 -> vector<1x256xf32>
    %cst_5 = arith.constant 0.000000e+00 : f32
    %21 = vector.broadcast %cst_5 : f32 to vector<1x256xf32>
    %22 = arith.select %19, %20, %21 : vector<1x256xi1>, vector<1x256xf32>
    %c3_i32_6 = arith.constant 3 : i32
    %23 = tpu.dynamic_rotate %7 by %c3_i32_6 dim 1 : vector<1x256xf32>, i32 -> vector<1x256xf32>
    %cst_7 = arith.constant 0.000000e+00 : f32
    %24 = vector.broadcast %cst_7 : f32 to vector<1x256xf32>
    %25 = arith.select %19, %23, %24 : vector<1x256xi1>, vector<1x256xf32>
    %c-2_i32 = arith.constant -2 : i32
    %26 = vector.broadcast %c-2_i32 : i32 to vector<1x256xi32>
    %27 = arith.addi %10, %26 : vector<1x256xi32>
    %c0_i32_8 = arith.constant 0 : i32
    %28 = vector.broadcast %c0_i32_8 : i32 to vector<1x256xi32>
    %29 = arith.cmpi sge, %27, %28 : vector<1x256xi32>
    %c-2_i32_9 = arith.constant -2 : i32
    %30 = vector.broadcast %c-2_i32_9 : i32 to vector<1x256xi32>
    %31 = arith.addi %10, %30 : vector<1x256xi32>
    %c16_i32_10 = arith.constant 16 : i32
    %32 = vector.broadcast %c16_i32_10 : i32 to vector<1x256xi32>
    %33 = arith.cmpi slt, %31, %32 : vector<1x256xi32>
    %34 = arith.andi %29, %33 : vector<1x256xi1>
    %c2_i32 = arith.constant 2 : i32
    %35 = tpu.dynamic_rotate %3 by %c2_i32 dim 1 : vector<1x256xf32>, i32 -> vector<1x256xf32>
    %cst_11 = arith.constant 0.000000e+00 : f32
    %36 = vector.broadcast %cst_11 : f32 to vector<1x256xf32>
    %37 = arith.select %34, %35, %36 : vector<1x256xi1>, vector<1x256xf32>
    %c2_i32_12 = arith.constant 2 : i32
    %38 = tpu.dynamic_rotate %7 by %c2_i32_12 dim 1 : vector<1x256xf32>, i32 -> vector<1x256xf32>
    %cst_13 = arith.constant 0.000000e+00 : f32
    %39 = vector.broadcast %cst_13 : f32 to vector<1x256xf32>
    %40 = arith.select %34, %38, %39 : vector<1x256xi1>, vector<1x256xf32>
    %c-1_i32 = arith.constant -1 : i32
    %41 = vector.broadcast %c-1_i32 : i32 to vector<1x256xi32>
    %42 = arith.addi %10, %41 : vector<1x256xi32>
    %c0_i32_14 = arith.constant 0 : i32
    %43 = vector.broadcast %c0_i32_14 : i32 to vector<1x256xi32>
    %44 = arith.cmpi sge, %42, %43 : vector<1x256xi32>
    %c-1_i32_15 = arith.constant -1 : i32
    %45 = vector.broadcast %c-1_i32_15 : i32 to vector<1x256xi32>
    %46 = arith.addi %10, %45 : vector<1x256xi32>
    %c16_i32_16 = arith.constant 16 : i32
    %47 = vector.broadcast %c16_i32_16 : i32 to vector<1x256xi32>
    %48 = arith.cmpi slt, %46, %47 : vector<1x256xi32>
    %49 = arith.andi %44, %48 : vector<1x256xi1>
    %c1_i32 = arith.constant 1 : i32
    %50 = tpu.dynamic_rotate %3 by %c1_i32 dim 1 : vector<1x256xf32>, i32 -> vector<1x256xf32>
    %cst_17 = arith.constant 0.000000e+00 : f32
    %51 = vector.broadcast %cst_17 : f32 to vector<1x256xf32>
    %52 = arith.select %49, %50, %51 : vector<1x256xi1>, vector<1x256xf32>
    %c1_i32_18 = arith.constant 1 : i32
    %53 = tpu.dynamic_rotate %7 by %c1_i32_18 dim 1 : vector<1x256xf32>, i32 -> vector<1x256xf32>
    %cst_19 = arith.constant 0.000000e+00 : f32
    %54 = vector.broadcast %cst_19 : f32 to vector<1x256xf32>
    %55 = arith.select %49, %53, %54 : vector<1x256xi1>, vector<1x256xf32>
    %c1_i32_20 = arith.constant 1 : i32
    %56 = vector.broadcast %c1_i32_20 : i32 to vector<1x256xi32>
    %57 = arith.addi %10, %56 : vector<1x256xi32>
    %c0_i32_21 = arith.constant 0 : i32
    %58 = vector.broadcast %c0_i32_21 : i32 to vector<1x256xi32>
    %59 = arith.cmpi sge, %57, %58 : vector<1x256xi32>
    %c1_i32_22 = arith.constant 1 : i32
    %60 = vector.broadcast %c1_i32_22 : i32 to vector<1x256xi32>
    %61 = arith.addi %10, %60 : vector<1x256xi32>
    %c16_i32_23 = arith.constant 16 : i32
    %62 = vector.broadcast %c16_i32_23 : i32 to vector<1x256xi32>
    %63 = arith.cmpi slt, %61, %62 : vector<1x256xi32>
    %64 = arith.andi %59, %63 : vector<1x256xi1>
    %c255_i32 = arith.constant 255 : i32
    %65 = tpu.dynamic_rotate %3 by %c255_i32 dim 1 : vector<1x256xf32>, i32 -> vector<1x256xf32>
    %cst_24 = arith.constant 0.000000e+00 : f32
    %66 = vector.broadcast %cst_24 : f32 to vector<1x256xf32>
    %67 = arith.select %64, %65, %66 : vector<1x256xi1>, vector<1x256xf32>
    %c255_i32_25 = arith.constant 255 : i32
    %68 = tpu.dynamic_rotate %7 by %c255_i32_25 dim 1 : vector<1x256xf32>, i32 -> vector<1x256xf32>
    %cst_26 = arith.constant 0.000000e+00 : f32
    %69 = vector.broadcast %cst_26 : f32 to vector<1x256xf32>
    %70 = arith.select %64, %68, %69 : vector<1x256xi1>, vector<1x256xf32>
    %c2_i32_27 = arith.constant 2 : i32
    %71 = vector.broadcast %c2_i32_27 : i32 to vector<1x256xi32>
    %72 = arith.addi %10, %71 : vector<1x256xi32>
    %c0_i32_28 = arith.constant 0 : i32
    %73 = vector.broadcast %c0_i32_28 : i32 to vector<1x256xi32>
    %74 = arith.cmpi sge, %72, %73 : vector<1x256xi32>
    %c2_i32_29 = arith.constant 2 : i32
    %75 = vector.broadcast %c2_i32_29 : i32 to vector<1x256xi32>
    %76 = arith.addi %10, %75 : vector<1x256xi32>
    %c16_i32_30 = arith.constant 16 : i32
    %77 = vector.broadcast %c16_i32_30 : i32 to vector<1x256xi32>
    %78 = arith.cmpi slt, %76, %77 : vector<1x256xi32>
    %79 = arith.andi %74, %78 : vector<1x256xi1>
    %c254_i32 = arith.constant 254 : i32
    %80 = tpu.dynamic_rotate %3 by %c254_i32 dim 1 : vector<1x256xf32>, i32 -> vector<1x256xf32>
    %cst_31 = arith.constant 0.000000e+00 : f32
    %81 = vector.broadcast %cst_31 : f32 to vector<1x256xf32>
    %82 = arith.select %79, %80, %81 : vector<1x256xi1>, vector<1x256xf32>
    %c254_i32_32 = arith.constant 254 : i32
    %83 = tpu.dynamic_rotate %7 by %c254_i32_32 dim 1 : vector<1x256xf32>, i32 -> vector<1x256xf32>
    %cst_33 = arith.constant 0.000000e+00 : f32
    %84 = vector.broadcast %cst_33 : f32 to vector<1x256xf32>
    %85 = arith.select %79, %83, %84 : vector<1x256xi1>, vector<1x256xf32>
    %c3_i32_34 = arith.constant 3 : i32
    %86 = vector.broadcast %c3_i32_34 : i32 to vector<1x256xi32>
    %87 = arith.addi %10, %86 : vector<1x256xi32>
    %c0_i32_35 = arith.constant 0 : i32
    %88 = vector.broadcast %c0_i32_35 : i32 to vector<1x256xi32>
    %89 = arith.cmpi sge, %87, %88 : vector<1x256xi32>
    %c3_i32_36 = arith.constant 3 : i32
    %90 = vector.broadcast %c3_i32_36 : i32 to vector<1x256xi32>
    %91 = arith.addi %10, %90 : vector<1x256xi32>
    %c16_i32_37 = arith.constant 16 : i32
    %92 = vector.broadcast %c16_i32_37 : i32 to vector<1x256xi32>
    %93 = arith.cmpi slt, %91, %92 : vector<1x256xi32>
    %94 = arith.andi %89, %93 : vector<1x256xi1>
    %c253_i32 = arith.constant 253 : i32
    %95 = tpu.dynamic_rotate %3 by %c253_i32 dim 1 : vector<1x256xf32>, i32 -> vector<1x256xf32>
    %cst_38 = arith.constant 0.000000e+00 : f32
    %96 = vector.broadcast %cst_38 : f32 to vector<1x256xf32>
    %97 = arith.select %94, %95, %96 : vector<1x256xi1>, vector<1x256xf32>
    %c253_i32_39 = arith.constant 253 : i32
    %98 = tpu.dynamic_rotate %7 by %c253_i32_39 dim 1 : vector<1x256xf32>, i32 -> vector<1x256xf32>
    %cst_40 = arith.constant 0.000000e+00 : f32
    %99 = vector.broadcast %cst_40 : f32 to vector<1x256xf32>
    %100 = arith.select %94, %98, %99 : vector<1x256xi1>, vector<1x256xf32>
    %c0_41 = arith.constant 0 : index
    %101 = memref.load %arg1[%c0_41] : memref<98xf32, #tpu.memory_space<smem>>
    %c49 = arith.constant 49 : index
    %102 = memref.load %arg1[%c49] : memref<98xf32, #tpu.memory_space<smem>>
    %103 = vector.broadcast %101 : f32 to vector<1x256xf32>
    %104 = arith.mulf %103, %22 : vector<1x256xf32>
    %105 = vector.broadcast %102 : f32 to vector<1x256xf32>
    %106 = arith.mulf %105, %25 : vector<1x256xf32>
    %107 = arith.addf %104, %106 : vector<1x256xf32>
    %c1 = arith.constant 1 : index
    %108 = memref.load %arg1[%c1] : memref<98xf32, #tpu.memory_space<smem>>
    %c50 = arith.constant 50 : index
    %109 = memref.load %arg1[%c50] : memref<98xf32, #tpu.memory_space<smem>>
    %110 = vector.broadcast %108 : f32 to vector<1x256xf32>
    %111 = arith.mulf %110, %37 : vector<1x256xf32>
    %112 = vector.broadcast %109 : f32 to vector<1x256xf32>
    %113 = arith.mulf %112, %40 : vector<1x256xf32>
    %114 = arith.addf %111, %113 : vector<1x256xf32>
    %115 = arith.addf %107, %114 : vector<1x256xf32>
    %c2 = arith.constant 2 : index
    %116 = memref.load %arg1[%c2] : memref<98xf32, #tpu.memory_space<smem>>
    %c51 = arith.constant 51 : index
    %117 = memref.load %arg1[%c51] : memref<98xf32, #tpu.memory_space<smem>>
    %118 = vector.broadcast %116 : f32 to vector<1x256xf32>
    %119 = arith.mulf %118, %52 : vector<1x256xf32>
    %120 = vector.broadcast %117 : f32 to vector<1x256xf32>
    %121 = arith.mulf %120, %55 : vector<1x256xf32>
    %122 = arith.addf %119, %121 : vector<1x256xf32>
    %123 = arith.addf %115, %122 : vector<1x256xf32>
    %c3 = arith.constant 3 : index
    %124 = memref.load %arg1[%c3] : memref<98xf32, #tpu.memory_space<smem>>
    %c52 = arith.constant 52 : index
    %125 = memref.load %arg1[%c52] : memref<98xf32, #tpu.memory_space<smem>>
    %126 = vector.broadcast %124 : f32 to vector<1x256xf32>
    %127 = arith.mulf %126, %3 : vector<1x256xf32>
    %128 = vector.broadcast %125 : f32 to vector<1x256xf32>
    %129 = arith.mulf %128, %7 : vector<1x256xf32>
    %130 = arith.addf %127, %129 : vector<1x256xf32>
    %131 = arith.addf %123, %130 : vector<1x256xf32>
    %c4 = arith.constant 4 : index
    %132 = memref.load %arg1[%c4] : memref<98xf32, #tpu.memory_space<smem>>
    %c53 = arith.constant 53 : index
    %133 = memref.load %arg1[%c53] : memref<98xf32, #tpu.memory_space<smem>>
    %134 = vector.broadcast %132 : f32 to vector<1x256xf32>
    %135 = arith.mulf %134, %67 : vector<1x256xf32>
    %136 = vector.broadcast %133 : f32 to vector<1x256xf32>
    %137 = arith.mulf %136, %70 : vector<1x256xf32>
    %138 = arith.addf %135, %137 : vector<1x256xf32>
    %139 = arith.addf %131, %138 : vector<1x256xf32>
    %c5 = arith.constant 5 : index
    %140 = memref.load %arg1[%c5] : memref<98xf32, #tpu.memory_space<smem>>
    %c54 = arith.constant 54 : index
    %141 = memref.load %arg1[%c54] : memref<98xf32, #tpu.memory_space<smem>>
    %142 = vector.broadcast %140 : f32 to vector<1x256xf32>
    %143 = arith.mulf %142, %82 : vector<1x256xf32>
    %144 = vector.broadcast %141 : f32 to vector<1x256xf32>
    %145 = arith.mulf %144, %85 : vector<1x256xf32>
    %146 = arith.addf %143, %145 : vector<1x256xf32>
    %147 = arith.addf %139, %146 : vector<1x256xf32>
    %c6 = arith.constant 6 : index
    %148 = memref.load %arg1[%c6] : memref<98xf32, #tpu.memory_space<smem>>
    %c55 = arith.constant 55 : index
    %149 = memref.load %arg1[%c55] : memref<98xf32, #tpu.memory_space<smem>>
    %150 = vector.broadcast %148 : f32 to vector<1x256xf32>
    %151 = arith.mulf %150, %97 : vector<1x256xf32>
    %152 = vector.broadcast %149 : f32 to vector<1x256xf32>
    %153 = arith.mulf %152, %100 : vector<1x256xf32>
    %154 = arith.addf %151, %153 : vector<1x256xf32>
    %155 = arith.addf %147, %154 : vector<1x256xf32>
    %c-48_i32 = arith.constant -48 : i32
    %156 = vector.broadcast %c-48_i32 : i32 to vector<1x256xi32>
    %157 = arith.addi %8, %156 : vector<1x256xi32>
    %c0_i32_42 = arith.constant 0 : i32
    %158 = vector.broadcast %c0_i32_42 : i32 to vector<1x256xi32>
    %159 = arith.cmpi sge, %157, %158 : vector<1x256xi32>
    %c-48_i32_43 = arith.constant -48 : i32
    %160 = vector.broadcast %c-48_i32_43 : i32 to vector<1x256xi32>
    %161 = arith.addi %8, %160 : vector<1x256xi32>
    %c256_i32 = arith.constant 256 : i32
    %162 = vector.broadcast %c256_i32 : i32 to vector<1x256xi32>
    %163 = arith.cmpi slt, %161, %162 : vector<1x256xi32>
    %164 = arith.andi %159, %163 : vector<1x256xi1>
    %c48_i32 = arith.constant 48 : i32
    %165 = tpu.dynamic_rotate %155 by %c48_i32 dim 1 : vector<1x256xf32>, i32 -> vector<1x256xf32>
    %cst_44 = arith.constant 0.000000e+00 : f32
    %166 = vector.broadcast %cst_44 : f32 to vector<1x256xf32>
    %167 = arith.select %164, %165, %166 : vector<1x256xi1>, vector<1x256xf32>
    %c7 = arith.constant 7 : index
    %168 = memref.load %arg1[%c7] : memref<98xf32, #tpu.memory_space<smem>>
    %c56 = arith.constant 56 : index
    %169 = memref.load %arg1[%c56] : memref<98xf32, #tpu.memory_space<smem>>
    %170 = vector.broadcast %168 : f32 to vector<1x256xf32>
    %171 = arith.mulf %170, %22 : vector<1x256xf32>
    %172 = vector.broadcast %169 : f32 to vector<1x256xf32>
    %173 = arith.mulf %172, %25 : vector<1x256xf32>
    %174 = arith.addf %171, %173 : vector<1x256xf32>
    %c8 = arith.constant 8 : index
    %175 = memref.load %arg1[%c8] : memref<98xf32, #tpu.memory_space<smem>>
    %c57 = arith.constant 57 : index
    %176 = memref.load %arg1[%c57] : memref<98xf32, #tpu.memory_space<smem>>
    %177 = vector.broadcast %175 : f32 to vector<1x256xf32>
    %178 = arith.mulf %177, %37 : vector<1x256xf32>
    %179 = vector.broadcast %176 : f32 to vector<1x256xf32>
    %180 = arith.mulf %179, %40 : vector<1x256xf32>
    %181 = arith.addf %178, %180 : vector<1x256xf32>
    %182 = arith.addf %174, %181 : vector<1x256xf32>
    %c9 = arith.constant 9 : index
    %183 = memref.load %arg1[%c9] : memref<98xf32, #tpu.memory_space<smem>>
    %c58 = arith.constant 58 : index
    %184 = memref.load %arg1[%c58] : memref<98xf32, #tpu.memory_space<smem>>
    %185 = vector.broadcast %183 : f32 to vector<1x256xf32>
    %186 = arith.mulf %185, %52 : vector<1x256xf32>
    %187 = vector.broadcast %184 : f32 to vector<1x256xf32>
    %188 = arith.mulf %187, %55 : vector<1x256xf32>
    %189 = arith.addf %186, %188 : vector<1x256xf32>
    %190 = arith.addf %182, %189 : vector<1x256xf32>
    %c10 = arith.constant 10 : index
    %191 = memref.load %arg1[%c10] : memref<98xf32, #tpu.memory_space<smem>>
    %c59 = arith.constant 59 : index
    %192 = memref.load %arg1[%c59] : memref<98xf32, #tpu.memory_space<smem>>
    %193 = vector.broadcast %191 : f32 to vector<1x256xf32>
    %194 = arith.mulf %193, %3 : vector<1x256xf32>
    %195 = vector.broadcast %192 : f32 to vector<1x256xf32>
    %196 = arith.mulf %195, %7 : vector<1x256xf32>
    %197 = arith.addf %194, %196 : vector<1x256xf32>
    %198 = arith.addf %190, %197 : vector<1x256xf32>
    %c11 = arith.constant 11 : index
    %199 = memref.load %arg1[%c11] : memref<98xf32, #tpu.memory_space<smem>>
    %c60 = arith.constant 60 : index
    %200 = memref.load %arg1[%c60] : memref<98xf32, #tpu.memory_space<smem>>
    %201 = vector.broadcast %199 : f32 to vector<1x256xf32>
    %202 = arith.mulf %201, %67 : vector<1x256xf32>
    %203 = vector.broadcast %200 : f32 to vector<1x256xf32>
    %204 = arith.mulf %203, %70 : vector<1x256xf32>
    %205 = arith.addf %202, %204 : vector<1x256xf32>
    %206 = arith.addf %198, %205 : vector<1x256xf32>
    %c12 = arith.constant 12 : index
    %207 = memref.load %arg1[%c12] : memref<98xf32, #tpu.memory_space<smem>>
    %c61 = arith.constant 61 : index
    %208 = memref.load %arg1[%c61] : memref<98xf32, #tpu.memory_space<smem>>
    %209 = vector.broadcast %207 : f32 to vector<1x256xf32>
    %210 = arith.mulf %209, %82 : vector<1x256xf32>
    %211 = vector.broadcast %208 : f32 to vector<1x256xf32>
    %212 = arith.mulf %211, %85 : vector<1x256xf32>
    %213 = arith.addf %210, %212 : vector<1x256xf32>
    %214 = arith.addf %206, %213 : vector<1x256xf32>
    %c13 = arith.constant 13 : index
    %215 = memref.load %arg1[%c13] : memref<98xf32, #tpu.memory_space<smem>>
    %c62 = arith.constant 62 : index
    %216 = memref.load %arg1[%c62] : memref<98xf32, #tpu.memory_space<smem>>
    %217 = vector.broadcast %215 : f32 to vector<1x256xf32>
    %218 = arith.mulf %217, %97 : vector<1x256xf32>
    %219 = vector.broadcast %216 : f32 to vector<1x256xf32>
    %220 = arith.mulf %219, %100 : vector<1x256xf32>
    %221 = arith.addf %218, %220 : vector<1x256xf32>
    %222 = arith.addf %214, %221 : vector<1x256xf32>
    %c-32_i32 = arith.constant -32 : i32
    %223 = vector.broadcast %c-32_i32 : i32 to vector<1x256xi32>
    %224 = arith.addi %8, %223 : vector<1x256xi32>
    %c0_i32_45 = arith.constant 0 : i32
    %225 = vector.broadcast %c0_i32_45 : i32 to vector<1x256xi32>
    %226 = arith.cmpi sge, %224, %225 : vector<1x256xi32>
    %c-32_i32_46 = arith.constant -32 : i32
    %227 = vector.broadcast %c-32_i32_46 : i32 to vector<1x256xi32>
    %228 = arith.addi %8, %227 : vector<1x256xi32>
    %c256_i32_47 = arith.constant 256 : i32
    %229 = vector.broadcast %c256_i32_47 : i32 to vector<1x256xi32>
    %230 = arith.cmpi slt, %228, %229 : vector<1x256xi32>
    %231 = arith.andi %226, %230 : vector<1x256xi1>
    %c32_i32 = arith.constant 32 : i32
    %232 = tpu.dynamic_rotate %222 by %c32_i32 dim 1 : vector<1x256xf32>, i32 -> vector<1x256xf32>
    %cst_48 = arith.constant 0.000000e+00 : f32
    %233 = vector.broadcast %cst_48 : f32 to vector<1x256xf32>
    %234 = arith.select %231, %232, %233 : vector<1x256xi1>, vector<1x256xf32>
    %c14 = arith.constant 14 : index
    %235 = memref.load %arg1[%c14] : memref<98xf32, #tpu.memory_space<smem>>
    %c63 = arith.constant 63 : index
    %236 = memref.load %arg1[%c63] : memref<98xf32, #tpu.memory_space<smem>>
    %237 = vector.broadcast %235 : f32 to vector<1x256xf32>
    %238 = arith.mulf %237, %22 : vector<1x256xf32>
    %239 = vector.broadcast %236 : f32 to vector<1x256xf32>
    %240 = arith.mulf %239, %25 : vector<1x256xf32>
    %241 = arith.addf %238, %240 : vector<1x256xf32>
    %c15 = arith.constant 15 : index
    %242 = memref.load %arg1[%c15] : memref<98xf32, #tpu.memory_space<smem>>
    %c64 = arith.constant 64 : index
    %243 = memref.load %arg1[%c64] : memref<98xf32, #tpu.memory_space<smem>>
    %244 = vector.broadcast %242 : f32 to vector<1x256xf32>
    %245 = arith.mulf %244, %37 : vector<1x256xf32>
    %246 = vector.broadcast %243 : f32 to vector<1x256xf32>
    %247 = arith.mulf %246, %40 : vector<1x256xf32>
    %248 = arith.addf %245, %247 : vector<1x256xf32>
    %249 = arith.addf %241, %248 : vector<1x256xf32>
    %c16 = arith.constant 16 : index
    %250 = memref.load %arg1[%c16] : memref<98xf32, #tpu.memory_space<smem>>
    %c65 = arith.constant 65 : index
    %251 = memref.load %arg1[%c65] : memref<98xf32, #tpu.memory_space<smem>>
    %252 = vector.broadcast %250 : f32 to vector<1x256xf32>
    %253 = arith.mulf %252, %52 : vector<1x256xf32>
    %254 = vector.broadcast %251 : f32 to vector<1x256xf32>
    %255 = arith.mulf %254, %55 : vector<1x256xf32>
    %256 = arith.addf %253, %255 : vector<1x256xf32>
    %257 = arith.addf %249, %256 : vector<1x256xf32>
    %c17 = arith.constant 17 : index
    %258 = memref.load %arg1[%c17] : memref<98xf32, #tpu.memory_space<smem>>
    %c66 = arith.constant 66 : index
    %259 = memref.load %arg1[%c66] : memref<98xf32, #tpu.memory_space<smem>>
    %260 = vector.broadcast %258 : f32 to vector<1x256xf32>
    %261 = arith.mulf %260, %3 : vector<1x256xf32>
    %262 = vector.broadcast %259 : f32 to vector<1x256xf32>
    %263 = arith.mulf %262, %7 : vector<1x256xf32>
    %264 = arith.addf %261, %263 : vector<1x256xf32>
    %265 = arith.addf %257, %264 : vector<1x256xf32>
    %c18 = arith.constant 18 : index
    %266 = memref.load %arg1[%c18] : memref<98xf32, #tpu.memory_space<smem>>
    %c67 = arith.constant 67 : index
    %267 = memref.load %arg1[%c67] : memref<98xf32, #tpu.memory_space<smem>>
    %268 = vector.broadcast %266 : f32 to vector<1x256xf32>
    %269 = arith.mulf %268, %67 : vector<1x256xf32>
    %270 = vector.broadcast %267 : f32 to vector<1x256xf32>
    %271 = arith.mulf %270, %70 : vector<1x256xf32>
    %272 = arith.addf %269, %271 : vector<1x256xf32>
    %273 = arith.addf %265, %272 : vector<1x256xf32>
    %c19 = arith.constant 19 : index
    %274 = memref.load %arg1[%c19] : memref<98xf32, #tpu.memory_space<smem>>
    %c68 = arith.constant 68 : index
    %275 = memref.load %arg1[%c68] : memref<98xf32, #tpu.memory_space<smem>>
    %276 = vector.broadcast %274 : f32 to vector<1x256xf32>
    %277 = arith.mulf %276, %82 : vector<1x256xf32>
    %278 = vector.broadcast %275 : f32 to vector<1x256xf32>
    %279 = arith.mulf %278, %85 : vector<1x256xf32>
    %280 = arith.addf %277, %279 : vector<1x256xf32>
    %281 = arith.addf %273, %280 : vector<1x256xf32>
    %c20 = arith.constant 20 : index
    %282 = memref.load %arg1[%c20] : memref<98xf32, #tpu.memory_space<smem>>
    %c69 = arith.constant 69 : index
    %283 = memref.load %arg1[%c69] : memref<98xf32, #tpu.memory_space<smem>>
    %284 = vector.broadcast %282 : f32 to vector<1x256xf32>
    %285 = arith.mulf %284, %97 : vector<1x256xf32>
    %286 = vector.broadcast %283 : f32 to vector<1x256xf32>
    %287 = arith.mulf %286, %100 : vector<1x256xf32>
    %288 = arith.addf %285, %287 : vector<1x256xf32>
    %289 = arith.addf %281, %288 : vector<1x256xf32>
    %c-16_i32 = arith.constant -16 : i32
    %290 = vector.broadcast %c-16_i32 : i32 to vector<1x256xi32>
    %291 = arith.addi %8, %290 : vector<1x256xi32>
    %c0_i32_49 = arith.constant 0 : i32
    %292 = vector.broadcast %c0_i32_49 : i32 to vector<1x256xi32>
    %293 = arith.cmpi sge, %291, %292 : vector<1x256xi32>
    %c-16_i32_50 = arith.constant -16 : i32
    %294 = vector.broadcast %c-16_i32_50 : i32 to vector<1x256xi32>
    %295 = arith.addi %8, %294 : vector<1x256xi32>
    %c256_i32_51 = arith.constant 256 : i32
    %296 = vector.broadcast %c256_i32_51 : i32 to vector<1x256xi32>
    %297 = arith.cmpi slt, %295, %296 : vector<1x256xi32>
    %298 = arith.andi %293, %297 : vector<1x256xi1>
    %c16_i32_52 = arith.constant 16 : i32
    %299 = tpu.dynamic_rotate %289 by %c16_i32_52 dim 1 : vector<1x256xf32>, i32 -> vector<1x256xf32>
    %cst_53 = arith.constant 0.000000e+00 : f32
    %300 = vector.broadcast %cst_53 : f32 to vector<1x256xf32>
    %301 = arith.select %298, %299, %300 : vector<1x256xi1>, vector<1x256xf32>
    %c21 = arith.constant 21 : index
    %302 = memref.load %arg1[%c21] : memref<98xf32, #tpu.memory_space<smem>>
    %c70 = arith.constant 70 : index
    %303 = memref.load %arg1[%c70] : memref<98xf32, #tpu.memory_space<smem>>
    %304 = vector.broadcast %302 : f32 to vector<1x256xf32>
    %305 = arith.mulf %304, %22 : vector<1x256xf32>
    %306 = vector.broadcast %303 : f32 to vector<1x256xf32>
    %307 = arith.mulf %306, %25 : vector<1x256xf32>
    %308 = arith.addf %305, %307 : vector<1x256xf32>
    %c22 = arith.constant 22 : index
    %309 = memref.load %arg1[%c22] : memref<98xf32, #tpu.memory_space<smem>>
    %c71 = arith.constant 71 : index
    %310 = memref.load %arg1[%c71] : memref<98xf32, #tpu.memory_space<smem>>
    %311 = vector.broadcast %309 : f32 to vector<1x256xf32>
    %312 = arith.mulf %311, %37 : vector<1x256xf32>
    %313 = vector.broadcast %310 : f32 to vector<1x256xf32>
    %314 = arith.mulf %313, %40 : vector<1x256xf32>
    %315 = arith.addf %312, %314 : vector<1x256xf32>
    %316 = arith.addf %308, %315 : vector<1x256xf32>
    %c23 = arith.constant 23 : index
    %317 = memref.load %arg1[%c23] : memref<98xf32, #tpu.memory_space<smem>>
    %c72 = arith.constant 72 : index
    %318 = memref.load %arg1[%c72] : memref<98xf32, #tpu.memory_space<smem>>
    %319 = vector.broadcast %317 : f32 to vector<1x256xf32>
    %320 = arith.mulf %319, %52 : vector<1x256xf32>
    %321 = vector.broadcast %318 : f32 to vector<1x256xf32>
    %322 = arith.mulf %321, %55 : vector<1x256xf32>
    %323 = arith.addf %320, %322 : vector<1x256xf32>
    %324 = arith.addf %316, %323 : vector<1x256xf32>
    %c24 = arith.constant 24 : index
    %325 = memref.load %arg1[%c24] : memref<98xf32, #tpu.memory_space<smem>>
    %c73 = arith.constant 73 : index
    %326 = memref.load %arg1[%c73] : memref<98xf32, #tpu.memory_space<smem>>
    %327 = vector.broadcast %325 : f32 to vector<1x256xf32>
    %328 = arith.mulf %327, %3 : vector<1x256xf32>
    %329 = vector.broadcast %326 : f32 to vector<1x256xf32>
    %330 = arith.mulf %329, %7 : vector<1x256xf32>
    %331 = arith.addf %328, %330 : vector<1x256xf32>
    %332 = arith.addf %324, %331 : vector<1x256xf32>
    %c25 = arith.constant 25 : index
    %333 = memref.load %arg1[%c25] : memref<98xf32, #tpu.memory_space<smem>>
    %c74 = arith.constant 74 : index
    %334 = memref.load %arg1[%c74] : memref<98xf32, #tpu.memory_space<smem>>
    %335 = vector.broadcast %333 : f32 to vector<1x256xf32>
    %336 = arith.mulf %335, %67 : vector<1x256xf32>
    %337 = vector.broadcast %334 : f32 to vector<1x256xf32>
    %338 = arith.mulf %337, %70 : vector<1x256xf32>
    %339 = arith.addf %336, %338 : vector<1x256xf32>
    %340 = arith.addf %332, %339 : vector<1x256xf32>
    %c26 = arith.constant 26 : index
    %341 = memref.load %arg1[%c26] : memref<98xf32, #tpu.memory_space<smem>>
    %c75 = arith.constant 75 : index
    %342 = memref.load %arg1[%c75] : memref<98xf32, #tpu.memory_space<smem>>
    %343 = vector.broadcast %341 : f32 to vector<1x256xf32>
    %344 = arith.mulf %343, %82 : vector<1x256xf32>
    %345 = vector.broadcast %342 : f32 to vector<1x256xf32>
    %346 = arith.mulf %345, %85 : vector<1x256xf32>
    %347 = arith.addf %344, %346 : vector<1x256xf32>
    %348 = arith.addf %340, %347 : vector<1x256xf32>
    %c27 = arith.constant 27 : index
    %349 = memref.load %arg1[%c27] : memref<98xf32, #tpu.memory_space<smem>>
    %c76 = arith.constant 76 : index
    %350 = memref.load %arg1[%c76] : memref<98xf32, #tpu.memory_space<smem>>
    %351 = vector.broadcast %349 : f32 to vector<1x256xf32>
    %352 = arith.mulf %351, %97 : vector<1x256xf32>
    %353 = vector.broadcast %350 : f32 to vector<1x256xf32>
    %354 = arith.mulf %353, %100 : vector<1x256xf32>
    %355 = arith.addf %352, %354 : vector<1x256xf32>
    %356 = arith.addf %348, %355 : vector<1x256xf32>
    %c28 = arith.constant 28 : index
    %357 = memref.load %arg1[%c28] : memref<98xf32, #tpu.memory_space<smem>>
    %c77 = arith.constant 77 : index
    %358 = memref.load %arg1[%c77] : memref<98xf32, #tpu.memory_space<smem>>
    %359 = vector.broadcast %357 : f32 to vector<1x256xf32>
    %360 = arith.mulf %359, %22 : vector<1x256xf32>
    %361 = vector.broadcast %358 : f32 to vector<1x256xf32>
    %362 = arith.mulf %361, %25 : vector<1x256xf32>
    %363 = arith.addf %360, %362 : vector<1x256xf32>
    %c29 = arith.constant 29 : index
    %364 = memref.load %arg1[%c29] : memref<98xf32, #tpu.memory_space<smem>>
    %c78 = arith.constant 78 : index
    %365 = memref.load %arg1[%c78] : memref<98xf32, #tpu.memory_space<smem>>
    %366 = vector.broadcast %364 : f32 to vector<1x256xf32>
    %367 = arith.mulf %366, %37 : vector<1x256xf32>
    %368 = vector.broadcast %365 : f32 to vector<1x256xf32>
    %369 = arith.mulf %368, %40 : vector<1x256xf32>
    %370 = arith.addf %367, %369 : vector<1x256xf32>
    %371 = arith.addf %363, %370 : vector<1x256xf32>
    %c30 = arith.constant 30 : index
    %372 = memref.load %arg1[%c30] : memref<98xf32, #tpu.memory_space<smem>>
    %c79 = arith.constant 79 : index
    %373 = memref.load %arg1[%c79] : memref<98xf32, #tpu.memory_space<smem>>
    %374 = vector.broadcast %372 : f32 to vector<1x256xf32>
    %375 = arith.mulf %374, %52 : vector<1x256xf32>
    %376 = vector.broadcast %373 : f32 to vector<1x256xf32>
    %377 = arith.mulf %376, %55 : vector<1x256xf32>
    %378 = arith.addf %375, %377 : vector<1x256xf32>
    %379 = arith.addf %371, %378 : vector<1x256xf32>
    %c31 = arith.constant 31 : index
    %380 = memref.load %arg1[%c31] : memref<98xf32, #tpu.memory_space<smem>>
    %c80 = arith.constant 80 : index
    %381 = memref.load %arg1[%c80] : memref<98xf32, #tpu.memory_space<smem>>
    %382 = vector.broadcast %380 : f32 to vector<1x256xf32>
    %383 = arith.mulf %382, %3 : vector<1x256xf32>
    %384 = vector.broadcast %381 : f32 to vector<1x256xf32>
    %385 = arith.mulf %384, %7 : vector<1x256xf32>
    %386 = arith.addf %383, %385 : vector<1x256xf32>
    %387 = arith.addf %379, %386 : vector<1x256xf32>
    %c32 = arith.constant 32 : index
    %388 = memref.load %arg1[%c32] : memref<98xf32, #tpu.memory_space<smem>>
    %c81 = arith.constant 81 : index
    %389 = memref.load %arg1[%c81] : memref<98xf32, #tpu.memory_space<smem>>
    %390 = vector.broadcast %388 : f32 to vector<1x256xf32>
    %391 = arith.mulf %390, %67 : vector<1x256xf32>
    %392 = vector.broadcast %389 : f32 to vector<1x256xf32>
    %393 = arith.mulf %392, %70 : vector<1x256xf32>
    %394 = arith.addf %391, %393 : vector<1x256xf32>
    %395 = arith.addf %387, %394 : vector<1x256xf32>
    %c33 = arith.constant 33 : index
    %396 = memref.load %arg1[%c33] : memref<98xf32, #tpu.memory_space<smem>>
    %c82 = arith.constant 82 : index
    %397 = memref.load %arg1[%c82] : memref<98xf32, #tpu.memory_space<smem>>
    %398 = vector.broadcast %396 : f32 to vector<1x256xf32>
    %399 = arith.mulf %398, %82 : vector<1x256xf32>
    %400 = vector.broadcast %397 : f32 to vector<1x256xf32>
    %401 = arith.mulf %400, %85 : vector<1x256xf32>
    %402 = arith.addf %399, %401 : vector<1x256xf32>
    %403 = arith.addf %395, %402 : vector<1x256xf32>
    %c34 = arith.constant 34 : index
    %404 = memref.load %arg1[%c34] : memref<98xf32, #tpu.memory_space<smem>>
    %c83 = arith.constant 83 : index
    %405 = memref.load %arg1[%c83] : memref<98xf32, #tpu.memory_space<smem>>
    %406 = vector.broadcast %404 : f32 to vector<1x256xf32>
    %407 = arith.mulf %406, %97 : vector<1x256xf32>
    %408 = vector.broadcast %405 : f32 to vector<1x256xf32>
    %409 = arith.mulf %408, %100 : vector<1x256xf32>
    %410 = arith.addf %407, %409 : vector<1x256xf32>
    %411 = arith.addf %403, %410 : vector<1x256xf32>
    %c16_i32_54 = arith.constant 16 : i32
    %412 = vector.broadcast %c16_i32_54 : i32 to vector<1x256xi32>
    %413 = arith.addi %8, %412 : vector<1x256xi32>
    %c0_i32_55 = arith.constant 0 : i32
    %414 = vector.broadcast %c0_i32_55 : i32 to vector<1x256xi32>
    %415 = arith.cmpi sge, %413, %414 : vector<1x256xi32>
    %c16_i32_56 = arith.constant 16 : i32
    %416 = vector.broadcast %c16_i32_56 : i32 to vector<1x256xi32>
    %417 = arith.addi %8, %416 : vector<1x256xi32>
    %c256_i32_57 = arith.constant 256 : i32
    %418 = vector.broadcast %c256_i32_57 : i32 to vector<1x256xi32>
    %419 = arith.cmpi slt, %417, %418 : vector<1x256xi32>
    %420 = arith.andi %415, %419 : vector<1x256xi1>
    %c240_i32 = arith.constant 240 : i32
    %421 = tpu.dynamic_rotate %411 by %c240_i32 dim 1 : vector<1x256xf32>, i32 -> vector<1x256xf32>
    %cst_58 = arith.constant 0.000000e+00 : f32
    %422 = vector.broadcast %cst_58 : f32 to vector<1x256xf32>
    %423 = arith.select %420, %421, %422 : vector<1x256xi1>, vector<1x256xf32>
    %c35 = arith.constant 35 : index
    %424 = memref.load %arg1[%c35] : memref<98xf32, #tpu.memory_space<smem>>
    %c84 = arith.constant 84 : index
    %425 = memref.load %arg1[%c84] : memref<98xf32, #tpu.memory_space<smem>>
    %426 = vector.broadcast %424 : f32 to vector<1x256xf32>
    %427 = arith.mulf %426, %22 : vector<1x256xf32>
    %428 = vector.broadcast %425 : f32 to vector<1x256xf32>
    %429 = arith.mulf %428, %25 : vector<1x256xf32>
    %430 = arith.addf %427, %429 : vector<1x256xf32>
    %c36 = arith.constant 36 : index
    %431 = memref.load %arg1[%c36] : memref<98xf32, #tpu.memory_space<smem>>
    %c85 = arith.constant 85 : index
    %432 = memref.load %arg1[%c85] : memref<98xf32, #tpu.memory_space<smem>>
    %433 = vector.broadcast %431 : f32 to vector<1x256xf32>
    %434 = arith.mulf %433, %37 : vector<1x256xf32>
    %435 = vector.broadcast %432 : f32 to vector<1x256xf32>
    %436 = arith.mulf %435, %40 : vector<1x256xf32>
    %437 = arith.addf %434, %436 : vector<1x256xf32>
    %438 = arith.addf %430, %437 : vector<1x256xf32>
    %c37 = arith.constant 37 : index
    %439 = memref.load %arg1[%c37] : memref<98xf32, #tpu.memory_space<smem>>
    %c86 = arith.constant 86 : index
    %440 = memref.load %arg1[%c86] : memref<98xf32, #tpu.memory_space<smem>>
    %441 = vector.broadcast %439 : f32 to vector<1x256xf32>
    %442 = arith.mulf %441, %52 : vector<1x256xf32>
    %443 = vector.broadcast %440 : f32 to vector<1x256xf32>
    %444 = arith.mulf %443, %55 : vector<1x256xf32>
    %445 = arith.addf %442, %444 : vector<1x256xf32>
    %446 = arith.addf %438, %445 : vector<1x256xf32>
    %c38 = arith.constant 38 : index
    %447 = memref.load %arg1[%c38] : memref<98xf32, #tpu.memory_space<smem>>
    %c87 = arith.constant 87 : index
    %448 = memref.load %arg1[%c87] : memref<98xf32, #tpu.memory_space<smem>>
    %449 = vector.broadcast %447 : f32 to vector<1x256xf32>
    %450 = arith.mulf %449, %3 : vector<1x256xf32>
    %451 = vector.broadcast %448 : f32 to vector<1x256xf32>
    %452 = arith.mulf %451, %7 : vector<1x256xf32>
    %453 = arith.addf %450, %452 : vector<1x256xf32>
    %454 = arith.addf %446, %453 : vector<1x256xf32>
    %c39 = arith.constant 39 : index
    %455 = memref.load %arg1[%c39] : memref<98xf32, #tpu.memory_space<smem>>
    %c88 = arith.constant 88 : index
    %456 = memref.load %arg1[%c88] : memref<98xf32, #tpu.memory_space<smem>>
    %457 = vector.broadcast %455 : f32 to vector<1x256xf32>
    %458 = arith.mulf %457, %67 : vector<1x256xf32>
    %459 = vector.broadcast %456 : f32 to vector<1x256xf32>
    %460 = arith.mulf %459, %70 : vector<1x256xf32>
    %461 = arith.addf %458, %460 : vector<1x256xf32>
    %462 = arith.addf %454, %461 : vector<1x256xf32>
    %c40 = arith.constant 40 : index
    %463 = memref.load %arg1[%c40] : memref<98xf32, #tpu.memory_space<smem>>
    %c89 = arith.constant 89 : index
    %464 = memref.load %arg1[%c89] : memref<98xf32, #tpu.memory_space<smem>>
    %465 = vector.broadcast %463 : f32 to vector<1x256xf32>
    %466 = arith.mulf %465, %82 : vector<1x256xf32>
    %467 = vector.broadcast %464 : f32 to vector<1x256xf32>
    %468 = arith.mulf %467, %85 : vector<1x256xf32>
    %469 = arith.addf %466, %468 : vector<1x256xf32>
    %470 = arith.addf %462, %469 : vector<1x256xf32>
    %c41 = arith.constant 41 : index
    %471 = memref.load %arg1[%c41] : memref<98xf32, #tpu.memory_space<smem>>
    %c90 = arith.constant 90 : index
    %472 = memref.load %arg1[%c90] : memref<98xf32, #tpu.memory_space<smem>>
    %473 = vector.broadcast %471 : f32 to vector<1x256xf32>
    %474 = arith.mulf %473, %97 : vector<1x256xf32>
    %475 = vector.broadcast %472 : f32 to vector<1x256xf32>
    %476 = arith.mulf %475, %100 : vector<1x256xf32>
    %477 = arith.addf %474, %476 : vector<1x256xf32>
    %478 = arith.addf %470, %477 : vector<1x256xf32>
    %c32_i32_59 = arith.constant 32 : i32
    %479 = vector.broadcast %c32_i32_59 : i32 to vector<1x256xi32>
    %480 = arith.addi %8, %479 : vector<1x256xi32>
    %c0_i32_60 = arith.constant 0 : i32
    %481 = vector.broadcast %c0_i32_60 : i32 to vector<1x256xi32>
    %482 = arith.cmpi sge, %480, %481 : vector<1x256xi32>
    %c32_i32_61 = arith.constant 32 : i32
    %483 = vector.broadcast %c32_i32_61 : i32 to vector<1x256xi32>
    %484 = arith.addi %8, %483 : vector<1x256xi32>
    %c256_i32_62 = arith.constant 256 : i32
    %485 = vector.broadcast %c256_i32_62 : i32 to vector<1x256xi32>
    %486 = arith.cmpi slt, %484, %485 : vector<1x256xi32>
    %487 = arith.andi %482, %486 : vector<1x256xi1>
    %c224_i32 = arith.constant 224 : i32
    %488 = tpu.dynamic_rotate %478 by %c224_i32 dim 1 : vector<1x256xf32>, i32 -> vector<1x256xf32>
    %cst_63 = arith.constant 0.000000e+00 : f32
    %489 = vector.broadcast %cst_63 : f32 to vector<1x256xf32>
    %490 = arith.select %487, %488, %489 : vector<1x256xi1>, vector<1x256xf32>
    %c42 = arith.constant 42 : index
    %491 = memref.load %arg1[%c42] : memref<98xf32, #tpu.memory_space<smem>>
    %c91 = arith.constant 91 : index
    %492 = memref.load %arg1[%c91] : memref<98xf32, #tpu.memory_space<smem>>
    %493 = vector.broadcast %491 : f32 to vector<1x256xf32>
    %494 = arith.mulf %493, %22 : vector<1x256xf32>
    %495 = vector.broadcast %492 : f32 to vector<1x256xf32>
    %496 = arith.mulf %495, %25 : vector<1x256xf32>
    %497 = arith.addf %494, %496 : vector<1x256xf32>
    %c43 = arith.constant 43 : index
    %498 = memref.load %arg1[%c43] : memref<98xf32, #tpu.memory_space<smem>>
    %c92 = arith.constant 92 : index
    %499 = memref.load %arg1[%c92] : memref<98xf32, #tpu.memory_space<smem>>
    %500 = vector.broadcast %498 : f32 to vector<1x256xf32>
    %501 = arith.mulf %500, %37 : vector<1x256xf32>
    %502 = vector.broadcast %499 : f32 to vector<1x256xf32>
    %503 = arith.mulf %502, %40 : vector<1x256xf32>
    %504 = arith.addf %501, %503 : vector<1x256xf32>
    %505 = arith.addf %497, %504 : vector<1x256xf32>
    %c44 = arith.constant 44 : index
    %506 = memref.load %arg1[%c44] : memref<98xf32, #tpu.memory_space<smem>>
    %c93 = arith.constant 93 : index
    %507 = memref.load %arg1[%c93] : memref<98xf32, #tpu.memory_space<smem>>
    %508 = vector.broadcast %506 : f32 to vector<1x256xf32>
    %509 = arith.mulf %508, %52 : vector<1x256xf32>
    %510 = vector.broadcast %507 : f32 to vector<1x256xf32>
    %511 = arith.mulf %510, %55 : vector<1x256xf32>
    %512 = arith.addf %509, %511 : vector<1x256xf32>
    %513 = arith.addf %505, %512 : vector<1x256xf32>
    %c45 = arith.constant 45 : index
    %514 = memref.load %arg1[%c45] : memref<98xf32, #tpu.memory_space<smem>>
    %c94 = arith.constant 94 : index
    %515 = memref.load %arg1[%c94] : memref<98xf32, #tpu.memory_space<smem>>
    %516 = vector.broadcast %514 : f32 to vector<1x256xf32>
    %517 = arith.mulf %516, %3 : vector<1x256xf32>
    %518 = vector.broadcast %515 : f32 to vector<1x256xf32>
    %519 = arith.mulf %518, %7 : vector<1x256xf32>
    %520 = arith.addf %517, %519 : vector<1x256xf32>
    %521 = arith.addf %513, %520 : vector<1x256xf32>
    %c46 = arith.constant 46 : index
    %522 = memref.load %arg1[%c46] : memref<98xf32, #tpu.memory_space<smem>>
    %c95 = arith.constant 95 : index
    %523 = memref.load %arg1[%c95] : memref<98xf32, #tpu.memory_space<smem>>
    %524 = vector.broadcast %522 : f32 to vector<1x256xf32>
    %525 = arith.mulf %524, %67 : vector<1x256xf32>
    %526 = vector.broadcast %523 : f32 to vector<1x256xf32>
    %527 = arith.mulf %526, %70 : vector<1x256xf32>
    %528 = arith.addf %525, %527 : vector<1x256xf32>
    %529 = arith.addf %521, %528 : vector<1x256xf32>
    %c47 = arith.constant 47 : index
    %530 = memref.load %arg1[%c47] : memref<98xf32, #tpu.memory_space<smem>>
    %c96 = arith.constant 96 : index
    %531 = memref.load %arg1[%c96] : memref<98xf32, #tpu.memory_space<smem>>
    %532 = vector.broadcast %530 : f32 to vector<1x256xf32>
    %533 = arith.mulf %532, %82 : vector<1x256xf32>
    %534 = vector.broadcast %531 : f32 to vector<1x256xf32>
    %535 = arith.mulf %534, %85 : vector<1x256xf32>
    %536 = arith.addf %533, %535 : vector<1x256xf32>
    %537 = arith.addf %529, %536 : vector<1x256xf32>
    %c48 = arith.constant 48 : index
    %538 = memref.load %arg1[%c48] : memref<98xf32, #tpu.memory_space<smem>>
    %c97 = arith.constant 97 : index
    %539 = memref.load %arg1[%c97] : memref<98xf32, #tpu.memory_space<smem>>
    %540 = vector.broadcast %538 : f32 to vector<1x256xf32>
    %541 = arith.mulf %540, %97 : vector<1x256xf32>
    %542 = vector.broadcast %539 : f32 to vector<1x256xf32>
    %543 = arith.mulf %542, %100 : vector<1x256xf32>
    %544 = arith.addf %541, %543 : vector<1x256xf32>
    %545 = arith.addf %537, %544 : vector<1x256xf32>
    %c48_i32_64 = arith.constant 48 : i32
    %546 = vector.broadcast %c48_i32_64 : i32 to vector<1x256xi32>
    %547 = arith.addi %8, %546 : vector<1x256xi32>
    %c0_i32_65 = arith.constant 0 : i32
    %548 = vector.broadcast %c0_i32_65 : i32 to vector<1x256xi32>
    %549 = arith.cmpi sge, %547, %548 : vector<1x256xi32>
    %c48_i32_66 = arith.constant 48 : i32
    %550 = vector.broadcast %c48_i32_66 : i32 to vector<1x256xi32>
    %551 = arith.addi %8, %550 : vector<1x256xi32>
    %c256_i32_67 = arith.constant 256 : i32
    %552 = vector.broadcast %c256_i32_67 : i32 to vector<1x256xi32>
    %553 = arith.cmpi slt, %551, %552 : vector<1x256xi32>
    %554 = arith.andi %549, %553 : vector<1x256xi1>
    %c208_i32 = arith.constant 208 : i32
    %555 = tpu.dynamic_rotate %545 by %c208_i32 dim 1 : vector<1x256xf32>, i32 -> vector<1x256xf32>
    %cst_68 = arith.constant 0.000000e+00 : f32
    %556 = vector.broadcast %cst_68 : f32 to vector<1x256xf32>
    %557 = arith.select %554, %555, %556 : vector<1x256xi1>, vector<1x256xf32>
    %558 = arith.addf %167, %234 : vector<1x256xf32>
    %559 = arith.addf %301, %356 : vector<1x256xf32>
    %560 = arith.addf %423, %490 : vector<1x256xf32>
    %561 = arith.addf %558, %559 : vector<1x256xf32>
    %562 = arith.addf %560, %557 : vector<1x256xf32>
    %563 = arith.addf %561, %562 : vector<1x256xf32>
    %564 = arith.negf %563 : vector<1x256xf32>
    %565 = math.exp %564 : vector<1x256xf32>
    %cst_69 = arith.constant 1.000000e+00 : f32
    %566 = vector.broadcast %cst_69 : f32 to vector<1x256xf32>
    %567 = arith.addf %566, %565 : vector<1x256xf32>
    %568 = arith.divf %566, %567 : vector<1x256xf32>
    %c0_70 = arith.constant 0 : index
    %c0_71 = arith.constant 0 : index
    %c0_72 = arith.constant 0 : index
    %569 = vector.load %arg2[%c0_70, %c0_71, %c0_72] : memref<1x4x256xf32, #tpu.memory_space<vmem>>, vector<1x4x256xf32>
    %570 = vector.shape_cast %569 : vector<1x4x256xf32> to vector<4x256xf32>
    %571 = vector.broadcast %568 : vector<1x256xf32> to vector<4x256xf32>
    %572 = arith.mulf %570, %571 : vector<4x256xf32>
    %c0_73 = arith.constant 0 : index
    %c0_74 = arith.constant 0 : index
    %c0_75 = arith.constant 0 : index
    %573 = vector.load %arg3[%c0_73, %c0_74, %c0_75] : memref<1x4x256xf32, #tpu.memory_space<vmem>>, vector<1x4x256xf32>
    %574 = vector.shape_cast %573 : vector<1x4x256xf32> to vector<4x256xf32>
    %575 = vector.shape_cast %572 : vector<4x256xf32> to vector<1x4x256xf32>
    tpu.vector_store %arg3[%c0_73, %c0_74, %c0_75], %575 {strides = array<i32>} : memref<1x4x256xf32, #tpu.memory_space<vmem>>, vector<1x4x256xf32>,
    return
  }
  func.func @transform_0(%arg0: i32) -> i32 {
    %c0_i32 = arith.constant 0 : i32
    %c0_i32_0 = arith.constant 0 : i32
    return %c0_i32 : i32
  }
  func.func @transform_1(%arg0: i32) -> (i32, i32, i32) {
    %c0_i32 = arith.constant 0 : i32
    %c0_i32_0 = arith.constant 0 : i32
    %c0_i32_1 = arith.constant 0 : i32
    return %arg0, %c0_i32, %c0_i32_0 : i32, i32, i32
  }
  func.func @transform_2(%arg0: i32) -> (i32, i32, i32) {
    %c0_i32 = arith.constant 0 : i32
    %c0_i32_0 = arith.constant 0 : i32
    %c0_i32_1 = arith.constant 0 : i32
    return %arg0, %c0_i32, %c0_i32_0 : i32, i32, i32
  }
}

</mosaic_0001>

<llo_original>
// kernel: tpu_custom_call.1
$region0: #{tpu_custom_call.1}
  #allocation0 [shape = 'u32[]', space=smem, size = 0x4, offset = 0x4, fixed_abs, tag = 'smem constant byte address 0x4 - core index']
  #allocation1 [shape = 'u32[144,128]{1,0:T(1,128)}', space=vmem, size = 0x12000, scoped, tag = 'internal scratch']
  %s0 = inlined_call_operand.hbm [shape: f32[98], index: 0, kind: input, shape index: {}]
  %s1 = inlined_call_operand.hbm [shape: f32[2,4,256], index: 1, kind: input, shape index: {}]
  %s2 = inlined_call_operand.hbm [shape: f32[2,4,256], index: 2, kind: output, shape index: {}]
  %s3 = sld [smem:[#allocation0]]
  $region49: #{tpu_custom_call.1} parent=0
    _
  %s5 = ssub.s32 1, %s3
  %s6 = scalar_select 0, %s5, %s3
  $region1: #{tpu_custom_call.1} parent=0
    #allocation2 [shape = 'u8[512]{0}', space=smem, size = 0x200, scoped, tag = 'input window, operand 0, single buffered']
    #allocation3 [shape = 's32[2]{0}', space=sflag, size = 0x8, scoped, tag = 'scoped memory for tpu_custom_call.1']
    #allocation4 [shape = 's32[2]{0}', space=sflag, size = 0x8, scoped, tag = 'scoped memory for tpu_custom_call.1']
    #allocation5 [shape = 's32[2]{0}', space=sflag, size = 0x8, scoped, tag = 'scoped memory for tpu_custom_call.1']
    #allocation6 [shape = 'u8[8192]{0}', space=vmem, size = 0x2000, scoped, tag = 'input window, operand 1']
    #allocation7 [shape = 'u8[8192]{0}', space=vmem, size = 0x2000, scoped, tag = 'output window, operand 0']
    %7 = vsyncpa [#allocation5], 0
    %8 = vsyncpa [#allocation3], 0
    %s9 = scalar_lea.sflag [#allocation3], 1
    %10 = vsyncpa %s9, 0
    %11 = vsyncpa [#allocation4], 0
    %s12 = scalar_lea.sflag [#allocation4], 1
    %13 = vsyncpa %s12, 0
    loop: start=0, step=1, limit=4
    $region2: #{tpu_custom_call.1} parent=1 // loop_pre_header
      _
    $region3: #{tpu_custom_call.1} parent=1 // loop_header
      %s15 = sphi 0, %s19
      %p16 = scmp.ge.s32.totalorder %s15, 4
      %s23 = sphi 0, %s23
      %s25 = sphi 0, %s23
      %s26 = sphi 0, %s25
      %s40 = sphi 0, %s26
      %s46 = sphi 0, %s48
      %s49 = sphi 0, %s46
      %s50 = sphi 0, %s49
      %s66 = sphi 0, %s50
      %s72 = sphi 0, %s74
      %s75 = sphi 0, %s72
      %s76 = sphi 0, %s75
      %s92 = sphi 0, %s76
    $region4: #{tpu_custom_call.1} parent=1 // loop_header_branch
      %18 = sbr.rel (%p16) target = $region8
    $region5: #{tpu_custom_call.1} parent=1 // loop_body
      %s20 = ssub.s32 %s15, 1
      %s21 = ssub.s32 %s15, 2
      %s22 = sadd.s32 %s15, 1
      %s24 = sadd.s32 %s23, 1
      %p27 = scmp.eq.s32.totalorder %s15, 1
      %p28 = scmp.ne.s32.totalorder %s23, %s25
      %p29 = scmp.eq.s32.totalorder %s15, 0
      %p30 = por %p28, %p29
      %p31 = scmp.ne.s32.totalorder %s23, %s25
      %p32 = scmp.eq.s32.totalorder %s20, 1
      %p33 = por %p31, %p32
      %p34 = scmp.ne.s32.totalorder %s25, %s26
      %p35 = scmp.eq.s32.totalorder %s20, 0
      %p36 = por %p34, %p35
      %p37 = scmp.ne.s32.totalorder %s25, %s26
      %p38 = scmp.eq.s32.totalorder %s21, 1
      %p39 = por %p37, %p38
      %p41 = scmp.ne.s32.totalorder %s26, %s40
      %p42 = scmp.eq.s32.totalorder %s21, 0
      %p43 = por %p41, %p42
      %s44 = ssub.s32 %s15, %s22
      %p45 = scmp.eq.s32.totalorder %s44, 0
      %s47 = sadd.s32 %s46, 1
      %s48 = scalar_select %p45, %s46, %s47
      %p51 = pneg %p45
      %p52 = scmp.eq.s32.totalorder %s15, 1
      %p53 = por %p51, %p52
      %p54 = scmp.ne.s32.totalorder %s46, %s49
      %p55 = scmp.eq.s32.totalorder %s15, 0
      %p56 = por %p54, %p55
      %p57 = scmp.ne.s32.totalorder %s46, %s49
      %p58 = scmp.eq.s32.totalorder %s20, 1
      %p59 = por %p57, %p58
      %p60 = scmp.ne.s32.totalorder %s49, %s50
      %p61 = scmp.eq.s32.totalorder %s20, 0
      %p62 = por %p60, %p61
      %p63 = scmp.ne.s32.totalorder %s49, %s50
      %p64 = scmp.eq.s32.totalorder %s21, 1
      %p65 = por %p63, %p64
      %p67 = scmp.ne.s32.totalorder %s50, %s66
      %p68 = scmp.eq.s32.totalorder %s21, 0
      %p69 = por %p67, %p68
      %s70 = ssub.s32 %s15, %s22
      %p71 = scmp.eq.s32.totalorder %s70, 0
      %s73 = sadd.s32 %s72, 1
      %s74 = scalar_select %p71, %s72, %s73
      %p77 = pneg %p71
      %p78 = scmp.eq.s32.totalorder %s15, 1
      %p79 = por %p77, %p78
      %p80 = scmp.ne.s32.totalorder %s72, %s75
      %p81 = scmp.eq.s32.totalorder %s15, 0
      %p82 = por %p80, %p81
      %p83 = scmp.ne.s32.totalorder %s72, %s75
      %p84 = scmp.eq.s32.totalorder %s20, 1
      %p85 = por %p83, %p84
      %p86 = scmp.ne.s32.totalorder %s75, %s76
      %p87 = scmp.eq.s32.totalorder %s20, 0
      %p88 = por %p86, %p87
      %p89 = scmp.ne.s32.totalorder %s75, %s76
      %p90 = scmp.eq.s32.totalorder %s21, 1
      %p91 = por %p89, %p90
      %p93 = scmp.ne.s32.totalorder %s76, %s92
      %p94 = scmp.eq.s32.totalorder %s21, 0
      %p95 = por %p93, %p94
      %p96 = scmp.le.s32.totalorder 1, %s15
      %p97 = scmp.lt.s32.totalorder %s15, 3
      %p98 = pnand %p96, %p97
      %p99 = pneg %p98
      // Predicated region
      $region9: #{tpu_custom_call.1} parent=5 // pred_check
        _
      $region10: #{tpu_custom_call.1} parent=5 // pred_check_branch
        %101 = sbr.rel (%p98) target = $region12
      $region11: #{tpu_custom_call.1} parent=5 // pred_region
        %s102 = ssub.s32 %s15, 1
        // Predicated region
        $region13: #{tpu_custom_call.1} parent=11 // pred_check
          %p103 = pneg %p36
        $region14: #{tpu_custom_call.1} parent=11 // pred_check_branch
          %105 = sbr.rel (%p103) target = $region16
        $region15: #{tpu_custom_call.1} parent=11 // pred_region
          %s107 = ssub.s32 16, 16
          %108 = vsyncadd [#allocation5], %s107
          %111 = dma.hbm_to_smem %s0, 16, [#allocation2], [#allocation5]
        $region16: #{tpu_custom_call.1} parent=11 // pred_fallthru
          _
      $region12: #{tpu_custom_call.1} parent=5 // pred_fallthru
        _
      %p112 = scmp.lt.s32.totalorder %s15, 2
      // Predicated region
      $region17: #{tpu_custom_call.1} parent=5 // pred_check
        %p113 = pneg %p112
      $region18: #{tpu_custom_call.1} parent=5 // pred_check_branch
        %115 = sbr.rel (%p113) target = $region20
      $region19: #{tpu_custom_call.1} parent=5 // pred_region
        // Predicated region
        $region21: #{tpu_custom_call.1} parent=19 // pred_check
          %p116 = pneg %p56
        $region22: #{tpu_custom_call.1} parent=19 // pred_check_branch
          %118 = sbr.rel (%p116) target = $region24
        $region23: #{tpu_custom_call.1} parent=19 // pred_region
          %s119 = sand.u32 %s46, 1
          %s120 = scalar_lea.sflag [#allocation3], %s119
          %s121 = sand.u32 %s46, 1
          %s122 = smul.addr %s121, 8
          %s123 = scalar_lea.vmem [#allocation6], %s122
          %s125 = ssub.s32 128, 128
          %126 = vsyncadd %s120, %s125
          %s127 = smul.addr %s15, 2
          %s128 = smul.addr %s127, 64
          %s129 = scalar_lea.hbm %s1, %s128
          %s131 = sshll.u32 %s123, 4
          %s132 = int_to_ptr.vmem [resolvable:$true] %s131
          %134 = dma.hbm_to_vmem [thread:$0]  %s129, 128, %s132, %s120
        $region24: #{tpu_custom_call.1} parent=19 // pred_fallthru
          _
      $region20: #{tpu_custom_call.1} parent=5 // pred_fallthru
        _
      %p135 = scmp.le.s32.totalorder 1, %s15
      %p136 = scmp.lt.s32.totalorder %s15, 3
      %p137 = pnand %p135, %p136
      %p138 = pneg %p137
      // Predicated region
      $region25: #{tpu_custom_call.1} parent=5 // pred_check
        _
      $region26: #{tpu_custom_call.1} parent=5 // pred_check_branch
        %140 = sbr.rel (%p137) target = $region28
      $region27: #{tpu_custom_call.1} parent=5 // pred_region
        %s141 = ssub.s32 %s15, 1
        // Predicated region
        $region29: #{tpu_custom_call.1} parent=27 // pred_check
          %p142 = pneg %p36
        $region30: #{tpu_custom_call.1} parent=27 // pred_check_branch
          %144 = sbr.rel (%p142) target = $region32
        $region31: #{tpu_custom_call.1} parent=27 // pred_region
          %145 = dma.done [#allocation5], 16
        $region32: #{tpu_custom_call.1} parent=27 // pred_fallthru
          _
        %s146 = sand.u32 %s49, 1
        %s147 = scalar_lea.sflag [#allocation3], %s146
        %s148 = sand.u32 %s49, 1
        %s149 = smul.addr %s148, 8
        %s150 = scalar_lea.vmem [#allocation6], %s149
        // Predicated region
        $region33: #{tpu_custom_call.1} parent=27 // pred_check
          %p151 = pneg %p62
        $region34: #{tpu_custom_call.1} parent=27 // pred_check_branch
          %153 = sbr.rel (%p151) target = $region36
        $region35: #{tpu_custom_call.1} parent=27 // pred_region
          %154 = dma.done %s147, 128
        $region36: #{tpu_custom_call.1} parent=27 // pred_fallthru
          _
        %155 = sfence
        %p156 = pneg %p36
        %p157 = pneg %p33
        %s158 = sand.u32 %s49, 1
        %s159 = scalar_lea.sflag [#allocation3], %s158
        %s160 = sand.u32 %s49, 1
        %s161 = smul.addr %s160, 8
        %s162 = scalar_lea.vmem [#allocation6], %s161
        %p163 = pneg %p62
        %p164 = pneg %p59
        %p165 = pneg %p88
        %p166 = pneg %p85
        %s167 = sand.u32 %s75, 1
        %s168 = scalar_lea.sflag [#allocation4], %s167
        %s169 = sand.u32 %s75, 1
        %s170 = smul.addr %s169, 8
        %s171 = scalar_lea.vmem [#allocation7], %s170
        %v172 = vld [vmem:[%s150] sm:$0xff]
        %v174 = vcombine.high %v172, %v172
        %vm176 = vcmask 1043456
        %v177 = vsel %vm176, %v172, -inf
        %v178 = vrot.slane %v177, 4
        %v179 = vmax.f32 %v177, %v178
        %v180 = vrot.slane %v179, 2
        %v181 = vmax.f32 %v179, %v180
        %v182 = vrot.slane %v181, 1
        %v183 = vmax.f32 %v181, %v182
        %v184 = vsel %vm176, %v174, -inf
        %v185 = vrot.slane %v184, 4
        %v186 = vmax.f32 %v184, %v185
        %v187 = vrot.slane %v186, 2
        %v188 = vmax.f32 %v186, %v187
        %v189 = vrot.slane %v188, 1
        %v190 = vmax.f32 %v188, %v189
        %v191 = vsel %vm176, %v172, 0.0
        %v192 = vrot.slane %v191, 4
        %v193 = vadd.f32 %v191, %v192
        %v194 = vrot.slane %v193, 2
        %v195 = vadd.f32 %v193, %v194
        %v196 = vrot.slane %v195, 1
        %v197 = vadd.f32 %v195, %v196
        %v198 = vsel %vm176, %v174, 0.0
        %v199 = vrot.slane %v198, 4
        %v200 = vadd.f32 %v198, %v199
        %v201 = vrot.slane %v200, 2
        %v202 = vadd.f32 %v200, %v201
        %v203 = vrot.slane %v202, 1
        %v204 = vadd.f32 %v202, %v203
        %v205 = vmul.f32 %v197, 0.25
        %v206 = vmul.f32 %v204, 0.25
        %v207 = vlaneseq
        %v208 = vand.u32 %v207, 127
        %v209 = vadd.s32 %v208, 128
        %v210 = vand.u32 %v208, 15
        %v211 = vand.u32 %v209, 15
        %v212 = vadd.s32 %v210, 4294967293
        %v213 = vadd.s32 %v211, 4294967293
        %vm214 = vcmp.ge.s32.totalorder %v212, 0
        %vm215 = vcmp.ge.s32.totalorder %v213, 0
        %vm216 = vcmp.lt.s32.totalorder %v212, 16
        %vm217 = vcmp.lt.s32.totalorder %v213, 16
        %vm218 = vmand %vm214, %vm216
        %vm219 = vmand %vm215, %vm217
        %220 = vrot.lane.b32.xlu0 %v183, 3
        %v221 = vpop.permute.xlu0 %220
        %222 = vrot.lane.b32.xlu0 %v190, 3
        %v223 = vpop.permute.xlu0 %222
        %vm224 = vcmp.lt.s32.totalorder %v208, 3
        %v225 = vsel %vm224, %v221, %v223
        %v226 = vsel %vm224, %v223, %v221
        %v227 = vsel %vm218, %v226, 0.0
        %v228 = vsel %vm219, %v225, 0.0
        %229 = vrot.lane.b32.xlu0 %v205, 3
        %v230 = vpop.permute.xlu0 %229
        %231 = vrot.lane.b32.xlu0 %v206, 3
        %v232 = vpop.permute.xlu0 %231
        %v233 = vsel %vm224, %v230, %v232
        %v234 = vsel %vm224, %v232, %v230
        %v235 = vsel %vm218, %v234, 0.0
        %v236 = vsel %vm219, %v233, 0.0
        %v237 = vadd.s32 %v210, 4294967294
        %v238 = vadd.s32 %v211, 4294967294
        %vm239 = vcmp.ge.s32.totalorder %v237, 0
        %vm240 = vcmp.ge.s32.totalorder %v238, 0
        %vm241 = vcmp.lt.s32.totalorder %v237, 16
        %vm242 = vcmp.lt.s32.totalorder %v238, 16
        %vm243 = vmand %vm239, %vm241
        %vm244 = vmand %vm240, %vm242
        %245 = vrot.lane.b32.xlu0 %v183, 2
        %v246 = vpop.permute.xlu0 %245
        %247 = vrot.lane.b32.xlu0 %v190, 2
        %v248 = vpop.permute.xlu0 %247
        %vm249 = vcmp.lt.s32.totalorder %v208, 2
        %v250 = vsel %vm249, %v246, %v248
        %v251 = vsel %vm249, %v248, %v246
        %v252 = vsel %vm243, %v251, 0.0
        %v253 = vsel %vm244, %v250, 0.0
        %254 = vrot.lane.b32.xlu0 %v205, 2
        %v255 = vpop.permute.xlu0 %254
        %256 = vrot.lane.b32.xlu0 %v206, 2
        %v257 = vpop.permute.xlu0 %256
        %v258 = vsel %vm249, %v255, %v257
        %v259 = vsel %vm249, %v257, %v255
        %v260 = vsel %vm243, %v259, 0.0
        %v261 = vsel %vm244, %v258, 0.0
        %v262 = vadd.s32 %v210, 4294967295
        %v263 = vadd.s32 %v211, 4294967295
        %vm264 = vcmp.ge.s32.totalorder %v262, 0
        %vm265 = vcmp.ge.s32.totalorder %v263, 0
        %vm266 = vcmp.lt.s32.totalorder %v262, 16
        %vm267 = vcmp.lt.s32.totalorder %v263, 16
        %vm268 = vmand %vm264, %vm266
        %vm269 = vmand %vm265, %vm267
        %270 = vrot.lane.b32.xlu0 %v183, 1
        %v271 = vpop.permute.xlu0 %270
        %272 = vrot.lane.b32.xlu0 %v190, 1
        %v273 = vpop.permute.xlu0 %272
        %vm274 = vcmp.lt.s32.totalorder %v208, 1
        %v275 = vsel %vm274, %v271, %v273
        %v276 = vsel %vm274, %v273, %v271
        %v277 = vsel %vm268, %v276, 0.0
        %v278 = vsel %vm269, %v275, 0.0
        %279 = vrot.lane.b32.xlu0 %v205, 1
        %v280 = vpop.permute.xlu0 %279
        %281 = vrot.lane.b32.xlu0 %v206, 1
        %v282 = vpop.permute.xlu0 %281
        %v283 = vsel %vm274, %v280, %v282
        %v284 = vsel %vm274, %v282, %v280
        %v285 = vsel %vm268, %v284, 0.0
        %v286 = vsel %vm269, %v283, 0.0
        %v287 = vadd.s32 %v210, 1
        %v288 = vadd.s32 %v211, 1
        %vm289 = vcmp.ge.s32.totalorder %v287, 0
        %vm290 = vcmp.ge.s32.totalorder %v288, 0
        %vm291 = vcmp.lt.s32.totalorder %v287, 16
        %vm292 = vcmp.lt.s32.totalorder %v288, 16
        %vm293 = vmand %vm289, %vm291
        %vm294 = vmand %vm290, %vm292
        %295 = vrot.lane.b32.xlu0 %v183, 127
        %v296 = vpop.permute.xlu0 %295
        %297 = vrot.lane.b32.xlu0 %v190, 127
        %v298 = vpop.permute.xlu0 %297
        %vm299 = vcmp.lt.s32.totalorder %v208, 127
        %v300 = vsel %vm299, %v296, %v298
        %v301 = vsel %vm299, %v298, %v296
        %v302 = vsel %vm293, %v300, 0.0
        %v303 = vsel %vm294, %v301, 0.0
        %304 = vrot.lane.b32.xlu0 %v205, 127
        %v305 = vpop.permute.xlu0 %304
        %306 = vrot.lane.b32.xlu0 %v206, 127
        %v307 = vpop.permute.xlu0 %306
        %v308 = vsel %vm299, %v305, %v307
        %v309 = vsel %vm299, %v307, %v305
        %v310 = vsel %vm293, %v308, 0.0
        %v311 = vsel %vm294, %v309, 0.0
        %v312 = vadd.s32 %v210, 2
        %v313 = vadd.s32 %v211, 2
        %vm314 = vcmp.ge.s32.totalorder %v312, 0
        %vm315 = vcmp.ge.s32.totalorder %v313, 0
        %vm316 = vcmp.lt.s32.totalorder %v312, 16
        %vm317 = vcmp.lt.s32.totalorder %v313, 16
        %vm318 = vmand %vm314, %vm316
        %vm319 = vmand %vm315, %vm317
        %320 = vrot.lane.b32.xlu0 %v183, 126
        %v321 = vpop.permute.xlu0 %320
        %322 = vrot.lane.b32.xlu0 %v190, 126
        %v323 = vpop.permute.xlu0 %322
        %vm324 = vcmp.lt.s32.totalorder %v208, 126
        %v325 = vsel %vm324, %v321, %v323
        %v326 = vsel %vm324, %v323, %v321
        %v327 = vsel %vm318, %v325, 0.0
        %v328 = vsel %vm319, %v326, 0.0
        %329 = vrot.lane.b32.xlu0 %v205, 126
        %v330 = vpop.permute.xlu0 %329
        %331 = vrot.lane.b32.xlu0 %v206, 126
        %v332 = vpop.permute.xlu0 %331
        %v333 = vsel %vm324, %v330, %v332
        %v334 = vsel %vm324, %v332, %v330
        %v335 = vsel %vm318, %v333, 0.0
        %v336 = vsel %vm319, %v334, 0.0
        %v337 = vadd.s32 %v210, 3
        %v338 = vadd.s32 %v211, 3
        %vm339 = vcmp.ge.s32.totalorder %v337, 0
        %vm340 = vcmp.ge.s32.totalorder %v338, 0
        %vm341 = vcmp.lt.s32.totalorder %v337, 16
        %vm342 = vcmp.lt.s32.totalorder %v338, 16
        %vm343 = vmand %vm339, %vm341
        %vm344 = vmand %vm340, %vm342
        %345 = vrot.lane.b32.xlu0 %v183, 125
        %v346 = vpop.permute.xlu0 %345
        %347 = vrot.lane.b32.xlu0 %v190, 125
        %v348 = vpop.permute.xlu0 %347
        %vm349 = vcmp.lt.s32.totalorder %v208, 125
        %v350 = vsel %vm349, %v346, %v348
        %v351 = vsel %vm349, %v348, %v346
        %v352 = vsel %vm343, %v350, 0.0
        %v353 = vsel %vm344, %v351, 0.0
        %354 = vrot.lane.b32.xlu0 %v205, 125
        %v355 = vpop.permute.xlu0 %354
        %356 = vrot.lane.b32.xlu0 %v206, 125
        %v357 = vpop.permute.xlu0 %356
        %v358 = vsel %vm349, %v355, %v357
        %v359 = vsel %vm349, %v357, %v355
        %v360 = vsel %vm343, %v358, 0.0
        %v361 = vsel %vm344, %v359, 0.0
        %s362 = sld [smem:[#allocation2]]
        %s363 = sld [smem:[#allocation2 + $0x31]]
        %v364 = vstv %s362
        %v365 = vmul.f32 %v364, %v227
        %v366 = vmul.f32 %v364, %v228
        %v367 = vstv %s363
        %v368 = vmul.f32 %v367, %v235
        %v369 = vmul.f32 %v367, %v236
        %v370 = vadd.f32 %v365, %v368
        %v371 = vadd.f32 %v366, %v369
        %s372 = sld [smem:[#allocation2 + $0x1]]
        %s373 = sld [smem:[#allocation2 + $0x32]]
        %v374 = vstv %s372
        %v375 = vmul.f32 %v374, %v252
        %v376 = vmul.f32 %v374, %v253
        %v377 = vstv %s373
        %v378 = vmul.f32 %v377, %v260
        %v379 = vmul.f32 %v377, %v261
        %v380 = vadd.f32 %v375, %v378
        %v381 = vadd.f32 %v376, %v379
        %v382 = vadd.f32 %v370, %v380
        %v383 = vadd.f32 %v371, %v381
        %s384 = sld [smem:[#allocation2 + $0x2]]
        %s385 = sld [smem:[#allocation2 + $0x33]]
        %v386 = vstv %s384
        %v387 = vmul.f32 %v386, %v277
        %v388 = vmul.f32 %v386, %v278
        %v389 = vstv %s385
        %v390 = vmul.f32 %v389, %v285
        %v391 = vmul.f32 %v389, %v286
        %v392 = vadd.f32 %v387, %v390
        %v393 = vadd.f32 %v388, %v391
        %v394 = vadd.f32 %v382, %v392
        %v395 = vadd.f32 %v383, %v393
        %s396 = sld [smem:[#allocation2 + $0x3]]
        %s397 = sld [smem:[#allocation2 + $0x34]]
        %v398 = vstv %s396
        %v399 = vmul.f32 %v398, %v183
        %v400 = vmul.f32 %v398, %v190
        %v401 = vstv %s397
        %v402 = vmul.f32 %v401, %v205
        %v403 = vmul.f32 %v401, %v206
        %v404 = vadd.f32 %v399, %v402
        %v405 = vadd.f32 %v400, %v403
        %v406 = vadd.f32 %v394, %v404
        %v407 = vadd.f32 %v395, %v405
        %s408 = sld [smem:[#allocation2 + $0x4]]
        %s409 = sld [smem:[#allocation2 + $0x35]]
        %v410 = vstv %s408
        %v411 = vmul.f32 %v410, %v302
        %v412 = vmul.f32 %v410, %v303
        %v413 = vstv %s409
        %v414 = vmul.f32 %v413, %v310
        %v415 = vmul.f32 %v413, %v311
        %v416 = vadd.f32 %v411, %v414
        %v417 = vadd.f32 %v412, %v415
        %v418 = vadd.f32 %v406, %v416
        %v419 = vadd.f32 %v407, %v417
        %s420 = sld [smem:[#allocation2 + $0x5]]
        %s421 = sld [smem:[#allocation2 + $0x36]]
        %v422 = vstv %s420
        %v423 = vmul.f32 %v422, %v327
        %v424 = vmul.f32 %v422, %v328
        %v425 = vstv %s421
        %v426 = vmul.f32 %v425, %v335
        %v427 = vmul.f32 %v425, %v336
        %v428 = vadd.f32 %v423, %v426
        %v429 = vadd.f32 %v424, %v427
        %v430 = vadd.f32 %v418, %v428
        %v431 = vadd.f32 %v419, %v429
        %s432 = sld [smem:[#allocation2 + $0x6]]
        %s433 = sld [smem:[#allocation2 + $0x37]]
        %v434 = vstv %s432
        %v435 = vmul.f32 %v434, %v352
        %v436 = vmul.f32 %v434, %v353
        %v437 = vstv %s433
        %v438 = vmul.f32 %v437, %v360
        %v439 = vmul.f32 %v437, %v361
        %v440 = vadd.f32 %v435, %v438
        %v441 = vadd.f32 %v436, %v439
        %v442 = vadd.f32 %v430, %v440
        %v443 = vadd.f32 %v431, %v441
        %v444 = vadd.s32 %v208, 4294967248
        %v445 = vadd.s32 %v209, 4294967248
        %vm446 = vcmp.ge.s32.totalorder %v444, 0
        %vm447 = vcmp.ge.s32.totalorder %v445, 0
        %vm448 = vcmp.lt.s32.totalorder %v444, 256
        %vm449 = vcmp.lt.s32.totalorder %v445, 256
        %vm450 = vmand %vm446, %vm448
        %vm451 = vmand %vm447, %vm449
        %452 = vrot.lane.b32.xlu0 %v442, 48
        %v453 = vpop.permute.xlu0 %452
        %454 = vrot.lane.b32.xlu0 %v443, 48
        %v455 = vpop.permute.xlu0 %454
        %vm456 = vcmp.lt.s32.totalorder %v208, 48
        %v457 = vsel %vm456, %v453, %v455
        %v458 = vsel %vm456, %v455, %v453
        %v459 = vsel %vm450, %v458, 0.0
        %v460 = vsel %vm451, %v457, 0.0
        %s461 = sld [smem:[#allocation2 + $0x7]]
        %s462 = sld [smem:[#allocation2 + $0x38]]
        %v463 = vstv %s461
        %v464 = vmul.f32 %v463, %v227
        %v465 = vmul.f32 %v463, %v228
        %v466 = vstv %s462
        %v467 = vmul.f32 %v466, %v235
        %v468 = vmul.f32 %v466, %v236
        %v469 = vadd.f32 %v464, %v467
        %v470 = vadd.f32 %v465, %v468
        %s471 = sld [smem:[#allocation2 + $0x8]]
        %s472 = sld [smem:[#allocation2 + $0x39]]
        %v473 = vstv %s471
        %v474 = vmul.f32 %v473, %v252
        %v475 = vmul.f32 %v473, %v253
        %v476 = vstv %s472
        %v477 = vmul.f32 %v476, %v260
        %v478 = vmul.f32 %v476, %v261
        %v479 = vadd.f32 %v474, %v477
        %v480 = vadd.f32 %v475, %v478
        %v481 = vadd.f32 %v469, %v479
        %v482 = vadd.f32 %v470, %v480
        %s483 = sld [smem:[#allocation2 + $0x9]]
        %s484 = sld [smem:[#allocation2 + $0x3a]]
        %v485 = vstv %s483
        %v486 = vmul.f32 %v485, %v277
        %v487 = vmul.f32 %v485, %v278
        %v488 = vstv %s484
        %v489 = vmul.f32 %v488, %v285
        %v490 = vmul.f32 %v488, %v286
        %v491 = vadd.f32 %v486, %v489
        %v492 = vadd.f32 %v487, %v490
        %v493 = vadd.f32 %v481, %v491
        %v494 = vadd.f32 %v482, %v492
        %s495 = sld [smem:[#allocation2 + $0xa]]
        %s496 = sld [smem:[#allocation2 + $0x3b]]
        %v497 = vstv %s495
        %v498 = vmul.f32 %v497, %v183
        %v499 = vmul.f32 %v497, %v190
        %v500 = vstv %s496
        %v501 = vmul.f32 %v500, %v205
        %v502 = vmul.f32 %v500, %v206
        %v503 = vadd.f32 %v498, %v501
        %v504 = vadd.f32 %v499, %v502
        %v505 = vadd.f32 %v493, %v503
        %v506 = vadd.f32 %v494, %v504
        %s507 = sld [smem:[#allocation2 + $0xb]]
        %s508 = sld [smem:[#allocation2 + $0x3c]]
        %v509 = vstv %s507
        %v510 = vmul.f32 %v509, %v302
        %v511 = vmul.f32 %v509, %v303
        %v512 = vstv %s508
        %v513 = vmul.f32 %v512, %v310
        %v514 = vmul.f32 %v512, %v311
        %v515 = vadd.f32 %v510, %v513
        %v516 = vadd.f32 %v511, %v514
        %v517 = vadd.f32 %v505, %v515
        %v518 = vadd.f32 %v506, %v516
        %s519 = sld [smem:[#allocation2 + $0xc]]
        %s520 = sld [smem:[#allocation2 + $0x3d]]
        %v521 = vstv %s519
        %v522 = vmul.f32 %v521, %v327
        %v523 = vmul.f32 %v521, %v328
        %v524 = vstv %s520
        %v525 = vmul.f32 %v524, %v335
        %v526 = vmul.f32 %v524, %v336
        %v527 = vadd.f32 %v522, %v525
        %v528 = vadd.f32 %v523, %v526
        %v529 = vadd.f32 %v517, %v527
        %v530 = vadd.f32 %v518, %v528
        %s531 = sld [smem:[#allocation2 + $0xd]]
        %s532 = sld [smem:[#allocation2 + $0x3e]]
        %v533 = vstv %s531
        %v534 = vmul.f32 %v533, %v352
        %v535 = vmul.f32 %v533, %v353
        %v536 = vstv %s532
        %v537 = vmul.f32 %v536, %v360
        %v538 = vmul.f32 %v536, %v361
        %v539 = vadd.f32 %v534, %v537
        %v540 = vadd.f32 %v535, %v538
        %v541 = vadd.f32 %v529, %v539
        %v542 = vadd.f32 %v530, %v540
        %v543 = vadd.s32 %v208, 4294967264
        %v544 = vadd.s32 %v209, 4294967264
        %vm545 = vcmp.ge.s32.totalorder %v543, 0
        %vm546 = vcmp.ge.s32.totalorder %v544, 0
        %vm547 = vcmp.lt.s32.totalorder %v543, 256
        %vm548 = vcmp.lt.s32.totalorder %v544, 256
        %vm549 = vmand %vm545, %vm547
        %vm550 = vmand %vm546, %vm548
        %551 = vrot.lane.b32.xlu0 %v541, 32
        %v552 = vpop.permute.xlu0 %551
        %553 = vrot.lane.b32.xlu0 %v542, 32
        %v554 = vpop.permute.xlu0 %553
        %vm555 = vcmp.lt.s32.totalorder %v208, 32
        %v556 = vsel %vm555, %v552, %v554
        %v557 = vsel %vm555, %v554, %v552
        %v558 = vsel %vm549, %v557, 0.0
        %v559 = vsel %vm550, %v556, 0.0
        %s560 = sld [smem:[#allocation2 + $0xe]]
        %s561 = sld [smem:[#allocation2 + $0x3f]]
        %v562 = vstv %s560
        %v563 = vmul.f32 %v562, %v227
        %v564 = vmul.f32 %v562, %v228
        %v565 = vstv %s561
        %v566 = vmul.f32 %v565, %v235
        %v567 = vmul.f32 %v565, %v236
        %v568 = vadd.f32 %v563, %v566
        %v569 = vadd.f32 %v564, %v567
        %s570 = sld [smem:[#allocation2 + $0xf]]
        %s571 = sld [smem:[#allocation2 + $0x40]]
        %v572 = vstv %s570
        %v573 = vmul.f32 %v572, %v252
        %v574 = vmul.f32 %v572, %v253
        %v575 = vstv %s571
        %v576 = vmul.f32 %v575, %v260
        %v577 = vmul.f32 %v575, %v261
        %v578 = vadd.f32 %v573, %v576
        %v579 = vadd.f32 %v574, %v577
        %v580 = vadd.f32 %v568, %v578
        %v581 = vadd.f32 %v569, %v579
        %s582 = sld [smem:[#allocation2 + $0x10]]
        %s583 = sld [smem:[#allocation2 + $0x41]]
        %v584 = vstv %s582
        %v585 = vmul.f32 %v584, %v277
        %v586 = vmul.f32 %v584, %v278
        %v587 = vstv %s583
        %v588 = vmul.f32 %v587, %v285
        %v589 = vmul.f32 %v587, %v286
        %v590 = vadd.f32 %v585, %v588
        %v591 = vadd.f32 %v586, %v589
        %v592 = vadd.f32 %v580, %v590
        %v593 = vadd.f32 %v581, %v591
        %s594 = sld [smem:[#allocation2 + $0x11]]
        %s595 = sld [smem:[#allocation2 + $0x42]]
        %v596 = vstv %s594
        %v597 = vmul.f32 %v596, %v183
        %v598 = vmul.f32 %v596, %v190
        %v599 = vstv %s595
        %v600 = vmul.f32 %v599, %v205
        %v601 = vmul.f32 %v599, %v206
        %v602 = vadd.f32 %v597, %v600
        %v603 = vadd.f32 %v598, %v601
        %v604 = vadd.f32 %v592, %v602
        %v605 = vadd.f32 %v593, %v603
        %s606 = sld [smem:[#allocation2 + $0x12]]
        %s607 = sld [smem:[#allocation2 + $0x43]]
        %v608 = vstv %s606
        %v609 = vmul.f32 %v608, %v302
        %v610 = vmul.f32 %v608, %v303
        %v611 = vstv %s607
        %v612 = vmul.f32 %v611, %v310
        %v613 = vmul.f32 %v611, %v311
        %v614 = vadd.f32 %v609, %v612
        %v615 = vadd.f32 %v610, %v613
        %v616 = vadd.f32 %v604, %v614
        %v617 = vadd.f32 %v605, %v615
        %s618 = sld [smem:[#allocation2 + $0x13]]
        %s619 = sld [smem:[#allocation2 + $0x44]]
        %v620 = vstv %s618
        %v621 = vmul.f32 %v620, %v327
        %v622 = vmul.f32 %v620, %v328
        %v623 = vstv %s619
        %v624 = vmul.f32 %v623, %v335
        %v625 = vmul.f32 %v623, %v336
        %v626 = vadd.f32 %v621, %v624
        %v627 = vadd.f32 %v622, %v625
        %v628 = vadd.f32 %v616, %v626
        %v629 = vadd.f32 %v617, %v627
        %s630 = sld [smem:[#allocation2 + $0x14]]
        %s631 = sld [smem:[#allocation2 + $0x45]]
        %v632 = vstv %s630
        %v633 = vmul.f32 %v632, %v352
        %v634 = vmul.f32 %v632, %v353
        %v635 = vstv %s631
        %v636 = vmul.f32 %v635, %v360
        %v637 = vmul.f32 %v635, %v361
        %v638 = vadd.f32 %v633, %v636
        %v639 = vadd.f32 %v634, %v637
        %v640 = vadd.f32 %v628, %v638
        %v641 = vadd.f32 %v629, %v639
        %v642 = vadd.s32 %v208, 4294967280
        %v643 = vadd.s32 %v209, 4294967280
        %vm644 = vcmp.ge.s32.totalorder %v642, 0
        %vm645 = vcmp.ge.s32.totalorder %v643, 0
        %vm646 = vcmp.lt.s32.totalorder %v642, 256
        %vm647 = vcmp.lt.s32.totalorder %v643, 256
        %vm648 = vmand %vm644, %vm646
        %vm649 = vmand %vm645, %vm647
        %650 = vrot.lane.b32.xlu0 %v640, 16
        %v651 = vpop.permute.xlu0 %650
        %652 = vrot.lane.b32.xlu0 %v641, 16
        %v653 = vpop.permute.xlu0 %652
        %vm654 = vcmp.lt.s32.totalorder %v208, 16
        %v655 = vsel %vm654, %v651, %v653
        %v656 = vsel %vm654, %v653, %v651
        %v657 = vsel %vm648, %v656, 0.0
        %v658 = vsel %vm649, %v655, 0.0
        %s659 = sld [smem:[#allocation2 + $0x15]]
        %s660 = sld [smem:[#allocation2 + $0x46]]
        %v661 = vstv %s659
        %v662 = vmul.f32 %v661, %v227
        %v663 = vmul.f32 %v661, %v228
        %v664 = vstv %s660
        %v665 = vmul.f32 %v664, %v235
        %v666 = vmul.f32 %v664, %v236
        %v667 = vadd.f32 %v662, %v665
        %v668 = vadd.f32 %v663, %v666
        %s669 = sld [smem:[#allocation2 + $0x16]]
        %s670 = sld [smem:[#allocation2 + $0x47]]
        %v671 = vstv %s669
        %v672 = vmul.f32 %v671, %v252
        %v673 = vmul.f32 %v671, %v253
        %v674 = vstv %s670
        %v675 = vmul.f32 %v674, %v260
        %v676 = vmul.f32 %v674, %v261
        %v677 = vadd.f32 %v672, %v675
        %v678 = vadd.f32 %v673, %v676
        %v679 = vadd.f32 %v667, %v677
        %v680 = vadd.f32 %v668, %v678
        %s681 = sld [smem:[#allocation2 + $0x17]]
        %s682 = sld [smem:[#allocation2 + $0x48]]
        %v683 = vstv %s681
        %v684 = vmul.f32 %v683, %v277
        %v685 = vmul.f32 %v683, %v278
        %v686 = vstv %s682
        %v687 = vmul.f32 %v686, %v285
        %v688 = vmul.f32 %v686, %v286
        %v689 = vadd.f32 %v684, %v687
        %v690 = vadd.f32 %v685, %v688
        %v691 = vadd.f32 %v679, %v689
        %v692 = vadd.f32 %v680, %v690
        %s693 = sld [smem:[#allocation2 + $0x18]]
        %s694 = sld [smem:[#allocation2 + $0x49]]
        %v695 = vstv %s693
        %v696 = vmul.f32 %v695, %v183
        %v697 = vmul.f32 %v695, %v190
        %v698 = vstv %s694
        %v699 = vmul.f32 %v698, %v205
        %v700 = vmul.f32 %v698, %v206
        %v701 = vadd.f32 %v696, %v699
        %v702 = vadd.f32 %v697, %v700
        %v703 = vadd.f32 %v691, %v701
        %v704 = vadd.f32 %v692, %v702
        %s705 = sld [smem:[#allocation2 + $0x19]]
        %s706 = sld [smem:[#allocation2 + $0x4a]]
        %v707 = vstv %s705
        %v708 = vmul.f32 %v707, %v302
        %v709 = vmul.f32 %v707, %v303
        %v710 = vstv %s706
        %v711 = vmul.f32 %v710, %v310
        %v712 = vmul.f32 %v710, %v311
        %v713 = vadd.f32 %v708, %v711
        %v714 = vadd.f32 %v709, %v712
        %v715 = vadd.f32 %v703, %v713
        %v716 = vadd.f32 %v704, %v714
        %s717 = sld [smem:[#allocation2 + $0x1a]]
        %s718 = sld [smem:[#allocation2 + $0x4b]]
        %v719 = vstv %s717
        %v720 = vmul.f32 %v719, %v327
        %v721 = vmul.f32 %v719, %v328
        %v722 = vstv %s718
        %v723 = vmul.f32 %v722, %v335
        %v724 = vmul.f32 %v722, %v336
        %v725 = vadd.f32 %v720, %v723
        %v726 = vadd.f32 %v721, %v724
        %v727 = vadd.f32 %v715, %v725
        %v728 = vadd.f32 %v716, %v726
        %s729 = sld [smem:[#allocation2 + $0x1b]]
        %s730 = sld [smem:[#allocation2 + $0x4c]]
        %v731 = vstv %s729
        %v732 = vmul.f32 %v731, %v352
        %v733 = vmul.f32 %v731, %v353
        %v734 = vstv %s730
        %v735 = vmul.f32 %v734, %v360
        %v736 = vmul.f32 %v734, %v361
        %v737 = vadd.f32 %v732, %v735
        %v738 = vadd.f32 %v733, %v736
        %v739 = vadd.f32 %v727, %v737
        %v740 = vadd.f32 %v728, %v738
        %s741 = sld [smem:[#allocation2 + $0x1c]]
        %s742 = sld [smem:[#allocation2 + $0x4d]]
        %v743 = vstv %s741
        %v744 = vmul.f32 %v743, %v227
        %v745 = vmul.f32 %v743, %v228
        %v746 = vstv %s742
        %v747 = vmul.f32 %v746, %v235
        %v748 = vmul.f32 %v746, %v236
        %v749 = vadd.f32 %v744, %v747
        %v750 = vadd.f32 %v745, %v748
        %s751 = sld [smem:[#allocation2 + $0x1d]]
        %s752 = sld [smem:[#allocation2 + $0x4e]]
        %v753 = vstv %s751
        %v754 = vmul.f32 %v753, %v252
        %v755 = vmul.f32 %v753, %v253
        %v756 = vstv %s752
        %v757 = vmul.f32 %v756, %v260
        %v758 = vmul.f32 %v756, %v261
        %v759 = vadd.f32 %v754, %v757
        %v760 = vadd.f32 %v755, %v758
        %v761 = vadd.f32 %v749, %v759
        %v762 = vadd.f32 %v750, %v760
        %s763 = sld [smem:[#allocation2 + $0x1e]]
        %s764 = sld [smem:[#allocation2 + $0x4f]]
        %v765 = vstv %s763
        %v766 = vmul.f32 %v765, %v277
        %v767 = vmul.f32 %v765, %v278
        %v768 = vstv %s764
        %v769 = vmul.f32 %v768, %v285
        %v770 = vmul.f32 %v768, %v286
        %v771 = vadd.f32 %v766, %v769
        %v772 = vadd.f32 %v767, %v770
        %v773 = vadd.f32 %v761, %v771
        %v774 = vadd.f32 %v762, %v772
        %s775 = sld [smem:[#allocation2 + $0x1f]]
        %s776 = sld [smem:[#allocation2 + $0x50]]
        %v777 = vstv %s775
        %v778 = vmul.f32 %v777, %v183
        %v779 = vmul.f32 %v777, %v190
        %v780 = vstv %s776
        %v781 = vmul.f32 %v780, %v205
        %v782 = vmul.f32 %v780, %v206
        %v783 = vadd.f32 %v778, %v781
        %v784 = vadd.f32 %v779, %v782
        %v785 = vadd.f32 %v773, %v783
        %v786 = vadd.f32 %v774, %v784
        %s787 = sld [smem:[#allocation2 + $0x20]]
        %s788 = sld [smem:[#allocation2 + $0x51]]
        %v789 = vstv %s787
        %v790 = vmul.f32 %v789, %v302
        %v791 = vmul.f32 %v789, %v303
        %v792 = vstv %s788
        %v793 = vmul.f32 %v792, %v310
        %v794 = vmul.f32 %v792, %v311
        %v795 = vadd.f32 %v790, %v793
        %v796 = vadd.f32 %v791, %v794
        %v797 = vadd.f32 %v785, %v795
        %v798 = vadd.f32 %v786, %v796
        %s799 = sld [smem:[#allocation2 + $0x21]]
        %s800 = sld [smem:[#allocation2 + $0x52]]
        %v801 = vstv %s799
        %v802 = vmul.f32 %v801, %v327
        %v803 = vmul.f32 %v801, %v328
        %v804 = vstv %s800
        %v805 = vmul.f32 %v804, %v335
        %v806 = vmul.f32 %v804, %v336
        %v807 = vadd.f32 %v802, %v805
        %v808 = vadd.f32 %v803, %v806
        %v809 = vadd.f32 %v797, %v807
        %v810 = vadd.f32 %v798, %v808
        %s811 = sld [smem:[#allocation2 + $0x22]]
        %s812 = sld [smem:[#allocation2 + $0x53]]
        %v813 = vstv %s811
        %v814 = vmul.f32 %v813, %v352
        %v815 = vmul.f32 %v813, %v353
        %v816 = vstv %s812
        %v817 = vmul.f32 %v816, %v360
        %v818 = vmul.f32 %v816, %v361
        %v819 = vadd.f32 %v814, %v817
        %v820 = vadd.f32 %v815, %v818
        %v821 = vadd.f32 %v809, %v819
        %v822 = vadd.f32 %v810, %v820
        %v823 = vadd.s32 %v208, 16
        %v824 = vadd.s32 %v209, 16
        %vm825 = vcmp.ge.s32.totalorder %v823, 0
        %vm826 = vcmp.ge.s32.totalorder %v824, 0
        %vm827 = vcmp.lt.s32.totalorder %v823, 256
        %vm828 = vcmp.lt.s32.totalorder %v824, 256
        %vm829 = vmand %vm825, %vm827
        %vm830 = vmand %vm826, %vm828
        %831 = vrot.lane.b32.xlu0 %v821, 112
        %v832 = vpop.permute.xlu0 %831
        %833 = vrot.lane.b32.xlu0 %v822, 112
        %v834 = vpop.permute.xlu0 %833
        %vm835 = vcmp.lt.s32.totalorder %v208, 112
        %v836 = vsel %vm835, %v832, %v834
        %v837 = vsel %vm835, %v834, %v832
        %v838 = vsel %vm829, %v836, 0.0
        %v839 = vsel %vm830, %v837, 0.0
        %s840 = sld [smem:[#allocation2 + $0x23]]
        %s841 = sld [smem:[#allocation2 + $0x54]]
        %v842 = vstv %s840
        %v843 = vmul.f32 %v842, %v227
        %v844 = vmul.f32 %v842, %v228
        %v845 = vstv %s841
        %v846 = vmul.f32 %v845, %v235
        %v847 = vmul.f32 %v845, %v236
        %v848 = vadd.f32 %v843, %v846
        %v849 = vadd.f32 %v844, %v847
        %s850 = sld [smem:[#allocation2 + $0x24]]
        %s851 = sld [smem:[#allocation2 + $0x55]]
        %v852 = vstv %s850
        %v853 = vmul.f32 %v852, %v252
        %v854 = vmul.f32 %v852, %v253
        %v855 = vstv %s851
        %v856 = vmul.f32 %v855, %v260
        %v857 = vmul.f32 %v855, %v261
        %v858 = vadd.f32 %v853, %v856
        %v859 = vadd.f32 %v854, %v857
        %v860 = vadd.f32 %v848, %v858
        %v861 = vadd.f32 %v849, %v859
        %s862 = sld [smem:[#allocation2 + $0x25]]
        %s863 = sld [smem:[#allocation2 + $0x56]]
        %v864 = vstv %s862
        %v865 = vmul.f32 %v864, %v277
        %v866 = vmul.f32 %v864, %v278
        %v867 = vstv %s863
        %v868 = vmul.f32 %v867, %v285
        %v869 = vmul.f32 %v867, %v286
        %v870 = vadd.f32 %v865, %v868
        %v871 = vadd.f32 %v866, %v869
        %v872 = vadd.f32 %v860, %v870
        %v873 = vadd.f32 %v861, %v871
        %s874 = sld [smem:[#allocation2 + $0x26]]
        %s875 = sld [smem:[#allocation2 + $0x57]]
        %v876 = vstv %s874
        %v877 = vmul.f32 %v876, %v183
        %v878 = vmul.f32 %v876, %v190
        %v879 = vstv %s875
        %v880 = vmul.f32 %v879, %v205
        %v881 = vmul.f32 %v879, %v206
        %v882 = vadd.f32 %v877, %v880
        %v883 = vadd.f32 %v878, %v881
        %v884 = vadd.f32 %v872, %v882
        %v885 = vadd.f32 %v873, %v883
        %s886 = sld [smem:[#allocation2 + $0x27]]
        %s887 = sld [smem:[#allocation2 + $0x58]]
        %v888 = vstv %s886
        %v889 = vmul.f32 %v888, %v302
        %v890 = vmul.f32 %v888, %v303
        %v891 = vstv %s887
        %v892 = vmul.f32 %v891, %v310
        %v893 = vmul.f32 %v891, %v311
        %v894 = vadd.f32 %v889, %v892
        %v895 = vadd.f32 %v890, %v893
        %v896 = vadd.f32 %v884, %v894
        %v897 = vadd.f32 %v885, %v895
        %s898 = sld [smem:[#allocation2 + $0x28]]
        %s899 = sld [smem:[#allocation2 + $0x59]]
        %v900 = vstv %s898
        %v901 = vmul.f32 %v900, %v327
        %v902 = vmul.f32 %v900, %v328
        %v903 = vstv %s899
        %v904 = vmul.f32 %v903, %v335
        %v905 = vmul.f32 %v903, %v336
        %v906 = vadd.f32 %v901, %v904
        %v907 = vadd.f32 %v902, %v905
        %v908 = vadd.f32 %v896, %v906
        %v909 = vadd.f32 %v897, %v907
        %s910 = sld [smem:[#allocation2 + $0x29]]
        %s911 = sld [smem:[#allocation2 + $0x5a]]
        %v912 = vstv %s910
        %v913 = vmul.f32 %v912, %v352
        %v914 = vmul.f32 %v912, %v353
        %v915 = vstv %s911
        %v916 = vmul.f32 %v915, %v360
        %v917 = vmul.f32 %v915, %v361
        %v918 = vadd.f32 %v913, %v916
        %v919 = vadd.f32 %v914, %v917
        %v920 = vadd.f32 %v908, %v918
        %v921 = vadd.f32 %v909, %v919
        %v922 = vadd.s32 %v208, 32
        %v923 = vadd.s32 %v209, 32
        %vm924 = vcmp.ge.s32.totalorder %v922, 0
        %vm925 = vcmp.ge.s32.totalorder %v923, 0
        %vm926 = vcmp.lt.s32.totalorder %v922, 256
        %vm927 = vcmp.lt.s32.totalorder %v923, 256
        %vm928 = vmand %vm924, %vm926
        %vm929 = vmand %vm925, %vm927
        %930 = vrot.lane.b32.xlu0 %v920, 96
        %v931 = vpop.permute.xlu0 %930
        %932 = vrot.lane.b32.xlu0 %v921, 96
        %v933 = vpop.permute.xlu0 %932
        %vm934 = vcmp.lt.s32.totalorder %v208, 96
        %v935 = vsel %vm934, %v931, %v933
        %v936 = vsel %vm934, %v933, %v931
        %v937 = vsel %vm928, %v935, 0.0
        %v938 = vsel %vm929, %v936, 0.0
        %s939 = sld [smem:[#allocation2 + $0x2a]]
        %s940 = sld [smem:[#allocation2 + $0x5b]]
        %v941 = vstv %s939
        %v942 = vmul.f32 %v941, %v227
        %v943 = vmul.f32 %v941, %v228
        %v944 = vstv %s940
        %v945 = vmul.f32 %v944, %v235
        %v946 = vmul.f32 %v944, %v236
        %v947 = vadd.f32 %v942, %v945
        %v948 = vadd.f32 %v943, %v946
        %s949 = sld [smem:[#allocation2 + $0x2b]]
        %s950 = sld [smem:[#allocation2 + $0x5c]]
        %v951 = vstv %s949
        %v952 = vmul.f32 %v951, %v252
        %v953 = vmul.f32 %v951, %v253
        %v954 = vstv %s950
        %v955 = vmul.f32 %v954, %v260
        %v956 = vmul.f32 %v954, %v261
        %v957 = vadd.f32 %v952, %v955
        %v958 = vadd.f32 %v953, %v956
        %v959 = vadd.f32 %v947, %v957
        %v960 = vadd.f32 %v948, %v958
        %s961 = sld [smem:[#allocation2 + $0x2c]]
        %s962 = sld [smem:[#allocation2 + $0x5d]]
        %v963 = vstv %s961
        %v964 = vmul.f32 %v963, %v277
        %v965 = vmul.f32 %v963, %v278
        %v966 = vstv %s962
        %v967 = vmul.f32 %v966, %v285
        %v968 = vmul.f32 %v966, %v286
        %v969 = vadd.f32 %v964, %v967
        %v970 = vadd.f32 %v965, %v968
        %v971 = vadd.f32 %v959, %v969
        %v972 = vadd.f32 %v960, %v970
        %s973 = sld [smem:[#allocation2 + $0x2d]]
        %s974 = sld [smem:[#allocation2 + $0x5e]]
        %v975 = vstv %s973
        %v976 = vmul.f32 %v975, %v183
        %v977 = vmul.f32 %v975, %v190
        %v978 = vstv %s974
        %v979 = vmul.f32 %v978, %v205
        %v980 = vmul.f32 %v978, %v206
        %v981 = vadd.f32 %v976, %v979
        %v982 = vadd.f32 %v977, %v980
        %v983 = vadd.f32 %v971, %v981
        %v984 = vadd.f32 %v972, %v982
        %s985 = sld [smem:[#allocation2 + $0x2e]]
        %s986 = sld [smem:[#allocation2 + $0x5f]]
        %v987 = vstv %s985
        %v988 = vmul.f32 %v987, %v302
        %v989 = vmul.f32 %v987, %v303
        %v990 = vstv %s986
        %v991 = vmul.f32 %v990, %v310
        %v992 = vmul.f32 %v990, %v311
        %v993 = vadd.f32 %v988, %v991
        %v994 = vadd.f32 %v989, %v992
        %v995 = vadd.f32 %v983, %v993
        %v996 = vadd.f32 %v984, %v994
        %s997 = sld [smem:[#allocation2 + $0x2f]]
        %s998 = sld [smem:[#allocation2 + $0x60]]
        %v999 = vstv %s997
        %v1000 = vmul.f32 %v999, %v327
        %v1001 = vmul.f32 %v999, %v328
        %v1002 = vstv %s998
        %v1003 = vmul.f32 %v1002, %v335
        %v1004 = vmul.f32 %v1002, %v336
        %v1005 = vadd.f32 %v1000, %v1003
        %v1006 = vadd.f32 %v1001, %v1004
        %v1007 = vadd.f32 %v995, %v1005
        %v1008 = vadd.f32 %v996, %v1006
        %s1009 = sld [smem:[#allocation2 + $0x30]]
        %s1010 = sld [smem:[#allocation2 + $0x61]]
        %v1011 = vstv %s1009
        %v1012 = vmul.f32 %v1011, %v352
        %v1013 = vmul.f32 %v1011, %v353
        %v1014 = vstv %s1010
        %v1015 = vmul.f32 %v1014, %v360
        %v1016 = vmul.f32 %v1014, %v361
        %v1017 = vadd.f32 %v1012, %v1015
        %v1018 = vadd.f32 %v1013, %v1016
        %v1019 = vadd.f32 %v1007, %v1017
        %v1020 = vadd.f32 %v1008, %v1018
        %v1021 = vadd.s32 %v208, 48
        %v1022 = vadd.s32 %v209, 48
        %vm1023 = vcmp.ge.s32.totalorder %v1021, 0
        %vm1024 = vcmp.ge.s32.totalorder %v1022, 0
        %vm1025 = vcmp.lt.s32.totalorder %v1021, 256
        %vm1026 = vcmp.lt.s32.totalorder %v1022, 256
        %vm1027 = vmand %vm1023, %vm1025
        %vm1028 = vmand %vm1024, %vm1026
        %1029 = vrot.lane.b32.xlu0 %v1019, 80
        %v1030 = vpop.permute.xlu0 %1029
        %1031 = vrot.lane.b32.xlu0 %v1020, 80
        %v1032 = vpop.permute.xlu0 %1031
        %vm1033 = vcmp.lt.s32.totalorder %v208, 80
        %v1034 = vsel %vm1033, %v1030, %v1032
        %v1035 = vsel %vm1033, %v1032, %v1030
        %v1036 = vsel %vm1027, %v1034, 0.0
        %v1037 = vsel %vm1028, %v1035, 0.0
        %v1038 = vadd.f32 %v459, %v558
        %v1039 = vadd.f32 %v460, %v559
        %v1040 = vadd.f32 %v657, %v739
        %v1041 = vadd.f32 %v658, %v740
        %v1042 = vadd.f32 %v838, %v937
        %v1043 = vadd.f32 %v839, %v938
        %v1044 = vadd.f32 %v1038, %v1040
        %v1045 = vadd.f32 %v1039, %v1041
        %v1046 = vadd.f32 %v1042, %v1036
        %v1047 = vadd.f32 %v1043, %v1037
        %v1048 = vadd.f32 %v1044, %v1046
        %v1049 = vadd.f32 %v1045, %v1047
        %v1050 = vxor.u32 %v1048, 2147483648
        %v1051 = vxor.u32 %v1049, 2147483648
        %v1052 = vmul.f32 %v1050, 1.442695
        %v1053 = vpow.pop %v1052
        %v1054 = vmul.f32 %v1051, 1.442695
        %v1055 = vpow.pop %v1054
        %v1056 = vadd.f32 %v1053, 1.0
        %v1057 = vadd.f32 %v1055, 1.0
        %v1058 = vrcp.pop %v1056
        %v1059 = vmul.f32 1.0, %v1058
        %v1060 = vrcp.pop %v1057
        %v1061 = vmul.f32 1.0, %v1060
        %v1062 = vlaneseq
        %v1063 = vshrl.u32 %v1062, 7
        %v1064 = vsub.s32 0, %v1063
        %v1065 = vrot.slane %v1059, %v1064
        %v1066 = vlaneseq
        %v1067 = vshrl.u32 %v1066, 7
        %v1068 = vsub.s32 0, %v1067
        %v1069 = vrot.slane %v1061, %v1068
        %v1072 = vcombine.low %v1065, %v1069
        %v1074 = vmul.f32 %v172, %v1072
        %1075 = vst [vmem:[%s171] sm:$0xff] %v1074
        %s1076 = sand.u32 %s75, 1
        %s1077 = scalar_lea.sflag [#allocation4], %s1076
        %s1078 = sand.u32 %s75, 1
        %s1079 = smul.addr %s1078, 8
        %s1080 = scalar_lea.vmem [#allocation7], %s1079
        // Predicated region
        $region37: #{tpu_custom_call.1} parent=27 // pred_check
          %p1081 = pneg %p85
        $region38: #{tpu_custom_call.1} parent=27 // pred_check_branch
          %1083 = sbr.rel (%p1081) target = $region40
        $region39: #{tpu_custom_call.1} parent=27 // pred_region
          %s1085 = ssub.s32 128, 128
          %1086 = vsyncadd %s1077, %s1085
          %s1087 = smul.addr %s20, 2
          %s1088 = smul.addr %s1087, 64
          %s1089 = scalar_lea.hbm %s2, %s1088
          %s1091 = sshll.u32 %s1080, 4
          %s1092 = int_to_ptr.vmem [resolvable:$true] %s1091
          %1094 = dma.vmem_to_hbm [thread:$0]  %s1092, 128, %s1089, %s1077
        $region40: #{tpu_custom_call.1} parent=27 // pred_fallthru
          _
      $region28: #{tpu_custom_call.1} parent=5 // pred_fallthru
        _
      %p1095 = scmp.le.s32.totalorder 2, %s15
      // Predicated region
      $region41: #{tpu_custom_call.1} parent=5 // pred_check
        %p1096 = pneg %p1095
      $region42: #{tpu_custom_call.1} parent=5 // pred_check_branch
        %1098 = sbr.rel (%p1096) target = $region44
      $region43: #{tpu_custom_call.1} parent=5 // pred_region
        %s1099 = ssub.s32 %s15, 2
        // Predicated region
        $region45: #{tpu_custom_call.1} parent=43 // pred_check
          %p1100 = pneg %p91
        $region46: #{tpu_custom_call.1} parent=43 // pred_check_branch
          %1102 = sbr.rel (%p1100) target = $region48
        $region47: #{tpu_custom_call.1} parent=43 // pred_region
          %s1103 = sand.u32 %s76, 1
          %s1104 = scalar_lea.sflag [#allocation4], %s1103
          %s1105 = sand.u32 %s76, 1
          %s1106 = smul.addr %s1105, 8
          %s1107 = scalar_lea.vmem [#allocation7], %s1106
          %1108 = dma.done %s1104, 128
        $region48: #{tpu_custom_call.1} parent=43 // pred_fallthru
          _
      $region44: #{tpu_custom_call.1} parent=5 // pred_fallthru
        _
    $region6: #{tpu_custom_call.1} parent=1 // loop_footer
      %s19 = sadd.s32 1, %s15
    $region7: #{tpu_custom_call.1} parent=1 // loop_footer_branch
      %14 = sbr.rel target = $region3
    $region8: #{tpu_custom_call.1} parent=1 // loop_exit
      _
    %1109 = vsyncpa [#allocation3], 1
    %s1110 = scalar_lea.sflag [#allocation3], 1
    %1111 = vsyncpa %s1110, 1
    %1112 = vsyncpa [#allocation4], 1
    %s1113 = scalar_lea.sflag [#allocation4], 1
    %1114 = vsyncpa %s1113, 1
    %1115 = vsyncpa [#allocation5], 1
    %s1116 = scalar_lea.sflag [#allocation5], 1
    %1117 = vsyncpa %s1116, 1

</llo_original>
